<compile_context>
chip_gen: v7x
topology: tpu7x:2x2x1
jax: 0.10.0
libtpu: 0.0.40
codegen_flags: <defaults>
</compile_context>

<pallas_src>
import jax
import jax.numpy as jnp
from jax import lax
from jax.experimental import pallas as pl
from jax.experimental.pallas import tpu as pltpu

LANE = 128        # vreg lane width
SUBLANE = 8       # f32 sublanes per vreg
CHUNK_ROWS = 32   # rows per register-resident chunk (4 f32 vregs)


def mlp_kernel(x_ref, p_ref, o_ref):
    # x_ref / o_ref: (br, 128) f32 VMEM tiles (batch on sublanes x lanes).
    # p_ref: (3*H + 1,) f32 SMEM params packed as [w1(H), b1(H), w2(H), b2(1)]
    #        (flattened since in_features == out_features == 1).
    br = x_ref.shape[0]
    hidden = (p_ref.shape[0] - 1) // 3          # static (20)

    # Static chunk size: whole vregs when the block allows it.
    if br % CHUNK_ROWS == 0:
        chunk = CHUNK_ROWS
    elif br % SUBLANE == 0:
        chunk = SUBLANE
    else:
        chunk = br                              # tiny single-step block
    n_chunks = br // chunk

    # Hoist all SMEM scalar reads once per grid step (not once per use/chunk).
    w1 = [p_ref[h] for h in range(hidden)]
    b1 = [p_ref[hidden + h] for h in range(hidden)]
    w2 = [p_ref[2 * hidden + h] for h in range(hidden)]
    b2 = p_ref[3 * hidden]

    def process(row_start):
        x = x_ref[pl.ds(row_start, chunk), :]
        # Two partial accumulators (even / odd h) -> independent VALU/EUP chains.
        acc0 = jnp.full_like(x, b2)             # b2 folded into the init
        acc1 = jnp.zeros_like(x)
        for h in range(0, hidden - 1, 2):
            acc0 = acc0 + w2[h] * jnp.sin(x * w1[h] + b1[h])
            acc1 = acc1 + w2[h + 1] * jnp.sin(x * w1[h + 1] + b1[h + 1])
        if hidden % 2:
            h = hidden - 1
            acc0 = acc0 + w2[h] * jnp.sin(x * w1[h] + b1[h])
        o_ref[pl.ds(row_start, chunk), :] = acc0 + acc1

    if n_chunks == 1:
        process(0)
    else:
        def body(c, carry):
            process(pl.multiple_of(c * chunk, chunk))
            return carry
        lax.fori_loop(0, n_chunks, body, 0)


def _round_up(a, b):
    return ((a + b - 1) // b) * b


def mynn2_forward(x, w1, b1, w2, b2, *, block_rows=2048):
    """Forward pass of MyNN2.

    x  : (N, 1) or (N,) float32
    w1, b1, w2 : (H,) float32  (denseI.weight / denseI.bias / denseII.weight,
                                flattened since in/out features == 1)
    b2 : (1,) float32          (denseII.bias)
    Returns (N, 1) float32.
    """
    x_flat = x.reshape(-1)
    N = x_flat.shape[0]

    rows = pl.cdiv(N, LANE)
    n_pad = rows * LANE
    if n_pad != N:
        # Ragged tail: pad up to a whole 128-lane row. Skipped entirely for the
        # common N % 128 == 0 case (reshape is metadata-only then).
        # TODO(synk): a fully copy-free ragged path would pass N as a
        # scalar-prefetch arg and mask the tail block in-kernel.
        x_flat = jnp.pad(x_flat, (0, n_pad - N))
    x2d = x_flat.reshape(rows, LANE)

    if rows <= 2 * CHUNK_ROWS:
        br = rows                               # tiny problem: single grid step
    else:
        # >= 2 grid steps (keeps both v7x TensorCores busy), each a multiple of
        # CHUNK_ROWS rows, capped at block_rows (1 MiB/tile at 2048 rows; 4 MiB
        # double-buffered fits every chip's scoped-VMEM default).
        block_rows = _round_up(max(block_rows, CHUNK_ROWS), CHUNK_ROWS)
        br = min(block_rows, _round_up(pl.cdiv(rows, 2), CHUNK_ROWS))
    grid = (pl.cdiv(rows, br),)

    # Single packed SMEM parameter stream: [w1, b1, w2, b2].
    params = jnp.concatenate(
        [w1.reshape(-1), b1.reshape(-1), w2.reshape(-1), b2.reshape(-1)]
    ).astype(jnp.float32)

    out2d = pl.pallas_call(
        mlp_kernel,
        out_shape=jax.ShapeDtypeStruct((rows, LANE), jnp.float32),
        grid=grid,
        in_specs=[
            pl.BlockSpec((br, LANE), lambda i: (i, 0)),           # x tile (VMEM)
            pl.BlockSpec(memory_space=pltpu.MemorySpace.SMEM),    # packed params
        ],
        out_specs=pl.BlockSpec((br, LANE), lambda i: (i, 0)),
        compiler_params=pltpu.CompilerParams(
            dimension_semantics=("parallel",)),
    )(x2d, params)

    out_flat = out2d.reshape(-1)
    if n_pad != N:
        out_flat = out_flat[:N]
    return out_flat.reshape(N, 1)


if __name__ == "__main__":
    key = jax.random.PRNGKey(0)
    k1, k2, k3, k4 = jax.random.split(key, 4)

    in_f, hid_f, out_f = 1, 20, 1
    # Deterministic PyTorch-like uniform init, flattened since in/out features == 1.
    w1 = jax.random.uniform(k1, (hid_f,), jnp.float32, -1.0, 1.0)        # denseI.weight
    b1 = jax.random.uniform(k2, (hid_f,), jnp.float32, -1.0, 1.0)        # denseI.bias
    bound = 1.0 / (hid_f ** 0.5)
    w2 = jax.random.uniform(k3, (hid_f,), jnp.float32, -bound, bound)    # denseII.weight
    b2 = jax.random.uniform(k4, (out_f,), jnp.float32, -bound, bound)    # denseII.bias

    # Same spirit as the PyTorch script: x = linspace(-5, 5, 1000).view(-1, 1)
    N = 1000
    x = jnp.linspace(-5.0, 5.0, N, dtype=jnp.float32).reshape(N, 1)

    fwd = jax.jit(mynn2_forward)
    out = jax.block_until_ready(fwd(x, w1, b1, w2, b2))

    # Pure-JAX reference for the same module (broadcast form of Linear(1->20),
    # full-precision matmul for Linear(20->1)).
    h_act = jnp.sin(x * w1.reshape(1, hid_f) + b1.reshape(1, hid_f))
    ref = jnp.matmul(h_act, w2.reshape(hid_f, 1),
                     precision=lax.Precision.HIGHEST) + b2

    assert out.shape == (N, 1)
    max_err = float(jnp.max(jnp.abs(out - ref)))
    assert jnp.allclose(out, ref, atol=5e-5, rtol=1e-5), max_err

    print("KERNEL_OK")
</pallas_src>

<mosaic_0001>
module attributes {stable_mosaic.version = 11 : i64} {
  func.func @mlp_kernel(%arg0: i32, %arg1: memref<8x128xf32, #tpu.memory_space<vmem>>, %arg2: memref<61xf32, #tpu.memory_space<smem>>, %arg3: memref<8x128xf32, #tpu.memory_space<vmem>>) attributes {dimension_semantics = [#tpu.dimension_semantics<parallel>], iteration_bounds = array<i64: 1>, scalar_prefetch = 0 : i64, scratch_operands = 0 : i64, tpu.core_type = #tpu.core_type<tc>, window_params = [{transform_indices = @transform_0, window_bounds = array<i64: 8, 128>}, {transform_indices = @transform_1, window_bounds = array<i64: 61>}, {transform_indices = @transform_2, window_bounds = array<i64: 8, 128>}]} {
    %c0 = arith.constant 0 : index
    %0 = memref.load %arg2[%c0] : memref<61xf32, #tpu.memory_space<smem>>
    %c1 = arith.constant 1 : index
    %1 = memref.load %arg2[%c1] : memref<61xf32, #tpu.memory_space<smem>>
    %c2 = arith.constant 2 : index
    %2 = memref.load %arg2[%c2] : memref<61xf32, #tpu.memory_space<smem>>
    %c3 = arith.constant 3 : index
    %3 = memref.load %arg2[%c3] : memref<61xf32, #tpu.memory_space<smem>>
    %c4 = arith.constant 4 : index
    %4 = memref.load %arg2[%c4] : memref<61xf32, #tpu.memory_space<smem>>
    %c5 = arith.constant 5 : index
    %5 = memref.load %arg2[%c5] : memref<61xf32, #tpu.memory_space<smem>>
    %c6 = arith.constant 6 : index
    %6 = memref.load %arg2[%c6] : memref<61xf32, #tpu.memory_space<smem>>
    %c7 = arith.constant 7 : index
    %7 = memref.load %arg2[%c7] : memref<61xf32, #tpu.memory_space<smem>>
    %c8 = arith.constant 8 : index
    %8 = memref.load %arg2[%c8] : memref<61xf32, #tpu.memory_space<smem>>
    %c9 = arith.constant 9 : index
    %9 = memref.load %arg2[%c9] : memref<61xf32, #tpu.memory_space<smem>>
    %c10 = arith.constant 10 : index
    %10 = memref.load %arg2[%c10] : memref<61xf32, #tpu.memory_space<smem>>
    %c11 = arith.constant 11 : index
    %11 = memref.load %arg2[%c11] : memref<61xf32, #tpu.memory_space<smem>>
    %c12 = arith.constant 12 : index
    %12 = memref.load %arg2[%c12] : memref<61xf32, #tpu.memory_space<smem>>
    %c13 = arith.constant 13 : index
    %13 = memref.load %arg2[%c13] : memref<61xf32, #tpu.memory_space<smem>>
    %c14 = arith.constant 14 : index
    %14 = memref.load %arg2[%c14] : memref<61xf32, #tpu.memory_space<smem>>
    %c15 = arith.constant 15 : index
    %15 = memref.load %arg2[%c15] : memref<61xf32, #tpu.memory_space<smem>>
    %c16 = arith.constant 16 : index
    %16 = memref.load %arg2[%c16] : memref<61xf32, #tpu.memory_space<smem>>
    %c17 = arith.constant 17 : index
    %17 = memref.load %arg2[%c17] : memref<61xf32, #tpu.memory_space<smem>>
    %c18 = arith.constant 18 : index
    %18 = memref.load %arg2[%c18] : memref<61xf32, #tpu.memory_space<smem>>
    %c19 = arith.constant 19 : index
    %19 = memref.load %arg2[%c19] : memref<61xf32, #tpu.memory_space<smem>>
    %c20 = arith.constant 20 : index
    %20 = memref.load %arg2[%c20] : memref<61xf32, #tpu.memory_space<smem>>
    %c21 = arith.constant 21 : index
    %21 = memref.load %arg2[%c21] : memref<61xf32, #tpu.memory_space<smem>>
    %c22 = arith.constant 22 : index
    %22 = memref.load %arg2[%c22] : memref<61xf32, #tpu.memory_space<smem>>
    %c23 = arith.constant 23 : index
    %23 = memref.load %arg2[%c23] : memref<61xf32, #tpu.memory_space<smem>>
    %c24 = arith.constant 24 : index
    %24 = memref.load %arg2[%c24] : memref<61xf32, #tpu.memory_space<smem>>
    %c25 = arith.constant 25 : index
    %25 = memref.load %arg2[%c25] : memref<61xf32, #tpu.memory_space<smem>>
    %c26 = arith.constant 26 : index
    %26 = memref.load %arg2[%c26] : memref<61xf32, #tpu.memory_space<smem>>
    %c27 = arith.constant 27 : index
    %27 = memref.load %arg2[%c27] : memref<61xf32, #tpu.memory_space<smem>>
    %c28 = arith.constant 28 : index
    %28 = memref.load %arg2[%c28] : memref<61xf32, #tpu.memory_space<smem>>
    %c29 = arith.constant 29 : index
    %29 = memref.load %arg2[%c29] : memref<61xf32, #tpu.memory_space<smem>>
    %c30 = arith.constant 30 : index
    %30 = memref.load %arg2[%c30] : memref<61xf32, #tpu.memory_space<smem>>
    %c31 = arith.constant 31 : index
    %31 = memref.load %arg2[%c31] : memref<61xf32, #tpu.memory_space<smem>>
    %c32 = arith.constant 32 : index
    %32 = memref.load %arg2[%c32] : memref<61xf32, #tpu.memory_space<smem>>
    %c33 = arith.constant 33 : index
    %33 = memref.load %arg2[%c33] : memref<61xf32, #tpu.memory_space<smem>>
    %c34 = arith.constant 34 : index
    %34 = memref.load %arg2[%c34] : memref<61xf32, #tpu.memory_space<smem>>
    %c35 = arith.constant 35 : index
    %35 = memref.load %arg2[%c35] : memref<61xf32, #tpu.memory_space<smem>>
    %c36 = arith.constant 36 : index
    %36 = memref.load %arg2[%c36] : memref<61xf32, #tpu.memory_space<smem>>
    %c37 = arith.constant 37 : index
    %37 = memref.load %arg2[%c37] : memref<61xf32, #tpu.memory_space<smem>>
    %c38 = arith.constant 38 : index
    %38 = memref.load %arg2[%c38] : memref<61xf32, #tpu.memory_space<smem>>
    %c39 = arith.constant 39 : index
    %39 = memref.load %arg2[%c39] : memref<61xf32, #tpu.memory_space<smem>>
    %c40 = arith.constant 40 : index
    %40 = memref.load %arg2[%c40] : memref<61xf32, #tpu.memory_space<smem>>
    %c41 = arith.constant 41 : index
    %41 = memref.load %arg2[%c41] : memref<61xf32, #tpu.memory_space<smem>>
    %c42 = arith.constant 42 : index
    %42 = memref.load %arg2[%c42] : memref<61xf32, #tpu.memory_space<smem>>
    %c43 = arith.constant 43 : index
    %43 = memref.load %arg2[%c43] : memref<61xf32, #tpu.memory_space<smem>>
    %c44 = arith.constant 44 : index
    %44 = memref.load %arg2[%c44] : memref<61xf32, #tpu.memory_space<smem>>
    %c45 = arith.constant 45 : index
    %45 = memref.load %arg2[%c45] : memref<61xf32, #tpu.memory_space<smem>>
    %c46 = arith.constant 46 : index
    %46 = memref.load %arg2[%c46] : memref<61xf32, #tpu.memory_space<smem>>
    %c47 = arith.constant 47 : index
    %47 = memref.load %arg2[%c47] : memref<61xf32, #tpu.memory_space<smem>>
    %c48 = arith.constant 48 : index
    %48 = memref.load %arg2[%c48] : memref<61xf32, #tpu.memory_space<smem>>
    %c49 = arith.constant 49 : index
    %49 = memref.load %arg2[%c49] : memref<61xf32, #tpu.memory_space<smem>>
    %c50 = arith.constant 50 : index
    %50 = memref.load %arg2[%c50] : memref<61xf32, #tpu.memory_space<smem>>
    %c51 = arith.constant 51 : index
    %51 = memref.load %arg2[%c51] : memref<61xf32, #tpu.memory_space<smem>>
    %c52 = arith.constant 52 : index
    %52 = memref.load %arg2[%c52] : memref<61xf32, #tpu.memory_space<smem>>
    %c53 = arith.constant 53 : index
    %53 = memref.load %arg2[%c53] : memref<61xf32, #tpu.memory_space<smem>>
    %c54 = arith.constant 54 : index
    %54 = memref.load %arg2[%c54] : memref<61xf32, #tpu.memory_space<smem>>
    %c55 = arith.constant 55 : index
    %55 = memref.load %arg2[%c55] : memref<61xf32, #tpu.memory_space<smem>>
    %c56 = arith.constant 56 : index
    %56 = memref.load %arg2[%c56] : memref<61xf32, #tpu.memory_space<smem>>
    %c57 = arith.constant 57 : index
    %57 = memref.load %arg2[%c57] : memref<61xf32, #tpu.memory_space<smem>>
    %c58 = arith.constant 58 : index
    %58 = memref.load %arg2[%c58] : memref<61xf32, #tpu.memory_space<smem>>
    %c59 = arith.constant 59 : index
    %59 = memref.load %arg2[%c59] : memref<61xf32, #tpu.memory_space<smem>>
    %c60 = arith.constant 60 : index
    %60 = memref.load %arg2[%c60] : memref<61xf32, #tpu.memory_space<smem>>
    %c0_0 = arith.constant 0 : index
    %c0_1 = arith.constant 0 : index
    %61 = vector.load %arg1[%c0_0, %c0_1] : memref<8x128xf32, #tpu.memory_space<vmem>>, vector<8x128xf32>
    %62 = vector.broadcast %60 : f32 to vector<8x128xf32>
    %cst = arith.constant 0.000000e+00 : f32
    %63 = vector.broadcast %cst : f32 to vector<8x128xf32>
    %64 = vector.broadcast %0 : f32 to vector<8x128xf32>
    %65 = arith.mulf %61, %64 : vector<8x128xf32>
    %66 = vector.broadcast %20 : f32 to vector<8x128xf32>
    %67 = arith.addf %65, %66 : vector<8x128xf32>
    %68 = math.sin %67 : vector<8x128xf32>
    %69 = vector.broadcast %40 : f32 to vector<8x128xf32>
    %70 = arith.mulf %69, %68 : vector<8x128xf32>
    %71 = arith.addf %62, %70 : vector<8x128xf32>
    %72 = vector.broadcast %1 : f32 to vector<8x128xf32>
    %73 = arith.mulf %61, %72 : vector<8x128xf32>
    %74 = vector.broadcast %21 : f32 to vector<8x128xf32>
    %75 = arith.addf %73, %74 : vector<8x128xf32>
    %76 = math.sin %75 : vector<8x128xf32>
    %77 = vector.broadcast %41 : f32 to vector<8x128xf32>
    %78 = arith.mulf %77, %76 : vector<8x128xf32>
    %79 = arith.addf %63, %78 : vector<8x128xf32>
    %80 = vector.broadcast %2 : f32 to vector<8x128xf32>
    %81 = arith.mulf %61, %80 : vector<8x128xf32>
    %82 = vector.broadcast %22 : f32 to vector<8x128xf32>
    %83 = arith.addf %81, %82 : vector<8x128xf32>
    %84 = math.sin %83 : vector<8x128xf32>
    %85 = vector.broadcast %42 : f32 to vector<8x128xf32>
    %86 = arith.mulf %85, %84 : vector<8x128xf32>
    %87 = arith.addf %71, %86 : vector<8x128xf32>
    %88 = vector.broadcast %3 : f32 to vector<8x128xf32>
    %89 = arith.mulf %61, %88 : vector<8x128xf32>
    %90 = vector.broadcast %23 : f32 to vector<8x128xf32>
    %91 = arith.addf %89, %90 : vector<8x128xf32>
    %92 = math.sin %91 : vector<8x128xf32>
    %93 = vector.broadcast %43 : f32 to vector<8x128xf32>
    %94 = arith.mulf %93, %92 : vector<8x128xf32>
    %95 = arith.addf %79, %94 : vector<8x128xf32>
    %96 = vector.broadcast %4 : f32 to vector<8x128xf32>
    %97 = arith.mulf %61, %96 : vector<8x128xf32>
    %98 = vector.broadcast %24 : f32 to vector<8x128xf32>
    %99 = arith.addf %97, %98 : vector<8x128xf32>
    %100 = math.sin %99 : vector<8x128xf32>
    %101 = vector.broadcast %44 : f32 to vector<8x128xf32>
    %102 = arith.mulf %101, %100 : vector<8x128xf32>
    %103 = arith.addf %87, %102 : vector<8x128xf32>
    %104 = vector.broadcast %5 : f32 to vector<8x128xf32>
    %105 = arith.mulf %61, %104 : vector<8x128xf32>
    %106 = vector.broadcast %25 : f32 to vector<8x128xf32>
    %107 = arith.addf %105, %106 : vector<8x128xf32>
    %108 = math.sin %107 : vector<8x128xf32>
    %109 = vector.broadcast %45 : f32 to vector<8x128xf32>
    %110 = arith.mulf %109, %108 : vector<8x128xf32>
    %111 = arith.addf %95, %110 : vector<8x128xf32>
    %112 = vector.broadcast %6 : f32 to vector<8x128xf32>
    %113 = arith.mulf %61, %112 : vector<8x128xf32>
    %114 = vector.broadcast %26 : f32 to vector<8x128xf32>
    %115 = arith.addf %113, %114 : vector<8x128xf32>
    %116 = math.sin %115 : vector<8x128xf32>
    %117 = vector.broadcast %46 : f32 to vector<8x128xf32>
    %118 = arith.mulf %117, %116 : vector<8x128xf32>
    %119 = arith.addf %103, %118 : vector<8x128xf32>
    %120 = vector.broadcast %7 : f32 to vector<8x128xf32>
    %121 = arith.mulf %61, %120 : vector<8x128xf32>
    %122 = vector.broadcast %27 : f32 to vector<8x128xf32>
    %123 = arith.addf %121, %122 : vector<8x128xf32>
    %124 = math.sin %123 : vector<8x128xf32>
    %125 = vector.broadcast %47 : f32 to vector<8x128xf32>
    %126 = arith.mulf %125, %124 : vector<8x128xf32>
    %127 = arith.addf %111, %126 : vector<8x128xf32>
    %128 = vector.broadcast %8 : f32 to vector<8x128xf32>
    %129 = arith.mulf %61, %128 : vector<8x128xf32>
    %130 = vector.broadcast %28 : f32 to vector<8x128xf32>
    %131 = arith.addf %129, %130 : vector<8x128xf32>
    %132 = math.sin %131 : vector<8x128xf32>
    %133 = vector.broadcast %48 : f32 to vector<8x128xf32>
    %134 = arith.mulf %133, %132 : vector<8x128xf32>
    %135 = arith.addf %119, %134 : vector<8x128xf32>
    %136 = vector.broadcast %9 : f32 to vector<8x128xf32>
    %137 = arith.mulf %61, %136 : vector<8x128xf32>
    %138 = vector.broadcast %29 : f32 to vector<8x128xf32>
    %139 = arith.addf %137, %138 : vector<8x128xf32>
    %140 = math.sin %139 : vector<8x128xf32>
    %141 = vector.broadcast %49 : f32 to vector<8x128xf32>
    %142 = arith.mulf %141, %140 : vector<8x128xf32>
    %143 = arith.addf %127, %142 : vector<8x128xf32>
    %144 = vector.broadcast %10 : f32 to vector<8x128xf32>
    %145 = arith.mulf %61, %144 : vector<8x128xf32>
    %146 = vector.broadcast %30 : f32 to vector<8x128xf32>
    %147 = arith.addf %145, %146 : vector<8x128xf32>
    %148 = math.sin %147 : vector<8x128xf32>
    %149 = vector.broadcast %50 : f32 to vector<8x128xf32>
    %150 = arith.mulf %149, %148 : vector<8x128xf32>
    %151 = arith.addf %135, %150 : vector<8x128xf32>
    %152 = vector.broadcast %11 : f32 to vector<8x128xf32>
    %153 = arith.mulf %61, %152 : vector<8x128xf32>
    %154 = vector.broadcast %31 : f32 to vector<8x128xf32>
    %155 = arith.addf %153, %154 : vector<8x128xf32>
    %156 = math.sin %155 : vector<8x128xf32>
    %157 = vector.broadcast %51 : f32 to vector<8x128xf32>
    %158 = arith.mulf %157, %156 : vector<8x128xf32>
    %159 = arith.addf %143, %158 : vector<8x128xf32>
    %160 = vector.broadcast %12 : f32 to vector<8x128xf32>
    %161 = arith.mulf %61, %160 : vector<8x128xf32>
    %162 = vector.broadcast %32 : f32 to vector<8x128xf32>
    %163 = arith.addf %161, %162 : vector<8x128xf32>
    %164 = math.sin %163 : vector<8x128xf32>
    %165 = vector.broadcast %52 : f32 to vector<8x128xf32>
    %166 = arith.mulf %165, %164 : vector<8x128xf32>
    %167 = arith.addf %151, %166 : vector<8x128xf32>
    %168 = vector.broadcast %13 : f32 to vector<8x128xf32>
    %169 = arith.mulf %61, %168 : vector<8x128xf32>
    %170 = vector.broadcast %33 : f32 to vector<8x128xf32>
    %171 = arith.addf %169, %170 : vector<8x128xf32>
    %172 = math.sin %171 : vector<8x128xf32>
    %173 = vector.broadcast %53 : f32 to vector<8x128xf32>
    %174 = arith.mulf %173, %172 : vector<8x128xf32>
    %175 = arith.addf %159, %174 : vector<8x128xf32>
    %176 = vector.broadcast %14 : f32 to vector<8x128xf32>
    %177 = arith.mulf %61, %176 : vector<8x128xf32>
    %178 = vector.broadcast %34 : f32 to vector<8x128xf32>
    %179 = arith.addf %177, %178 : vector<8x128xf32>
    %180 = math.sin %179 : vector<8x128xf32>
    %181 = vector.broadcast %54 : f32 to vector<8x128xf32>
    %182 = arith.mulf %181, %180 : vector<8x128xf32>
    %183 = arith.addf %167, %182 : vector<8x128xf32>
    %184 = vector.broadcast %15 : f32 to vector<8x128xf32>
    %185 = arith.mulf %61, %184 : vector<8x128xf32>
    %186 = vector.broadcast %35 : f32 to vector<8x128xf32>
    %187 = arith.addf %185, %186 : vector<8x128xf32>
    %188 = math.sin %187 : vector<8x128xf32>
    %189 = vector.broadcast %55 : f32 to vector<8x128xf32>
    %190 = arith.mulf %189, %188 : vector<8x128xf32>
    %191 = arith.addf %175, %190 : vector<8x128xf32>
    %192 = vector.broadcast %16 : f32 to vector<8x128xf32>
    %193 = arith.mulf %61, %192 : vector<8x128xf32>
    %194 = vector.broadcast %36 : f32 to vector<8x128xf32>
    %195 = arith.addf %193, %194 : vector<8x128xf32>
    %196 = math.sin %195 : vector<8x128xf32>
    %197 = vector.broadcast %56 : f32 to vector<8x128xf32>
    %198 = arith.mulf %197, %196 : vector<8x128xf32>
    %199 = arith.addf %183, %198 : vector<8x128xf32>
    %200 = vector.broadcast %17 : f32 to vector<8x128xf32>
    %201 = arith.mulf %61, %200 : vector<8x128xf32>
    %202 = vector.broadcast %37 : f32 to vector<8x128xf32>
    %203 = arith.addf %201, %202 : vector<8x128xf32>
    %204 = math.sin %203 : vector<8x128xf32>
    %205 = vector.broadcast %57 : f32 to vector<8x128xf32>
    %206 = arith.mulf %205, %204 : vector<8x128xf32>
    %207 = arith.addf %191, %206 : vector<8x128xf32>
    %208 = vector.broadcast %18 : f32 to vector<8x128xf32>
    %209 = arith.mulf %61, %208 : vector<8x128xf32>
    %210 = vector.broadcast %38 : f32 to vector<8x128xf32>
    %211 = arith.addf %209, %210 : vector<8x128xf32>
    %212 = math.sin %211 : vector<8x128xf32>
    %213 = vector.broadcast %58 : f32 to vector<8x128xf32>
    %214 = arith.mulf %213, %212 : vector<8x128xf32>
    %215 = arith.addf %199, %214 : vector<8x128xf32>
    %216 = vector.broadcast %19 : f32 to vector<8x128xf32>
    %217 = arith.mulf %61, %216 : vector<8x128xf32>
    %218 = vector.broadcast %39 : f32 to vector<8x128xf32>
    %219 = arith.addf %217, %218 : vector<8x128xf32>
    %220 = math.sin %219 : vector<8x128xf32>
    %221 = vector.broadcast %59 : f32 to vector<8x128xf32>
    %222 = arith.mulf %221, %220 : vector<8x128xf32>
    %223 = arith.addf %207, %222 : vector<8x128xf32>
    %224 = arith.addf %215, %223 : vector<8x128xf32>
    %c0_2 = arith.constant 0 : index
    %c0_3 = arith.constant 0 : index
    %225 = vector.load %arg3[%c0_2, %c0_3] : memref<8x128xf32, #tpu.memory_space<vmem>>, vector<8x128xf32>
    tpu.vector_store %arg3[%c0_2, %c0_3], %224 {strides = array<i32>} : memref<8x128xf32, #tpu.memory_space<vmem>>, vector<8x128xf32>,
    return
  }
  func.func @transform_0(%arg0: i32) -> (i32, i32) {
    %c0_i32 = arith.constant 0 : i32
    %c0_i32_0 = arith.constant 0 : i32
    return %arg0, %c0_i32 : i32, i32
  }
  func.func @transform_1(%arg0: i32) -> i32 {
    %c0_i32 = arith.constant 0 : i32
    %c0_i32_0 = arith.constant 0 : i32
    return %c0_i32 : i32
  }
  func.func @transform_2(%arg0: i32) -> (i32, i32) {
    %c0_i32 = arith.constant 0 : i32
    %c0_i32_0 = arith.constant 0 : i32
    return %arg0, %c0_i32 : i32, i32
  }
}

</mosaic_0001>

<llo_original>
// kernel: mynn2_forward.1
$region0: #{mynn2_forward.1}
  #allocation0 [shape = 'u32[]', space=smem, size = 0x4, offset = 0x4, fixed_abs, tag = 'smem constant byte address 0x4 - core index']
  #allocation1 [shape = 'u32[144,128]{1,0:T(1,128)}', space=vmem, size = 0x12000, scoped, tag = 'internal scratch']
  %s0 = inlined_call_operand.vmem [shape: f32[8,128], index: 0, kind: input, shape index: {}]
  %s1 = inlined_call_operand.vmem [shape: f32[61], index: 1, kind: input, shape index: {}]
  %s2 = inlined_call_operand.hbm [shape: f32[8,128], index: 2, kind: output, shape index: {}]
  %s3 = sld [smem:[#allocation0]]
  $region22: #{mynn2_forward.1} parent=0
    _
  %s5 = ssub.s32 1, %s3
  %s6 = scalar_select 0, %s5, %s3
  $region1: #{mynn2_forward.1} parent=0
    #allocation2 [shape = 'u8[512]{0}', space=smem, size = 0x200, scoped, tag = 'input window, operand 1, single buffered']
    #allocation3 [shape = 's32[1]{0}', space=sflag, size = 0x4, scoped, tag = 'scoped memory for mynn2_forward.1']
    #allocation4 [shape = 's32[1]{0}', space=sflag, size = 0x4, scoped, tag = 'scoped memory for mynn2_forward.1']
    #allocation5 [shape = 'u8[4096]{0}', space=vmem, size = 0x1000, scoped, tag = 'output window, operand 0, single buffered']
    %7 = vsyncpa [#allocation4], 0
    %8 = vsyncpa [#allocation3], 0
    // Predicated region
    $region2: #{mynn2_forward.1} parent=1 // pred_check
      _
    $region3: #{mynn2_forward.1} parent=1 // pred_check_branch
      %10 = sbr.rel (0) target = $region5
    $region4: #{mynn2_forward.1} parent=1 // pred_region
      _
    $region5: #{mynn2_forward.1} parent=1 // pred_fallthru
      _
    // Predicated region
    $region6: #{mynn2_forward.1} parent=1 // pred_check
      _
    $region7: #{mynn2_forward.1} parent=1 // pred_check_branch
      %12 = sbr.rel (0) target = $region9
    $region8: #{mynn2_forward.1} parent=1 // pred_region
      %s14 = ssub.s32 16, 16
      %15 = vsyncadd [#allocation4], %s14
      %s17 = sshll.u32 %s1, 4
      %s18 = int_to_ptr.vmem [resolvable:$true] %s17
      %20 = dma.vmem_to_smem %s18, 16, [#allocation2], [#allocation4]
    $region9: #{mynn2_forward.1} parent=1 // pred_fallthru
      _
    // Predicated region
    $region10: #{mynn2_forward.1} parent=1 // pred_check
      _
    $region11: #{mynn2_forward.1} parent=1 // pred_check_branch
      %22 = sbr.rel (0) target = $region13
    $region12: #{mynn2_forward.1} parent=1 // pred_region
      %23 = dma.done [#allocation4], 16
    $region13: #{mynn2_forward.1} parent=1 // pred_fallthru
      _
    %24 = sfence
    %s25 = sld [smem:[#allocation2]]
    %s26 = sld [smem:[#allocation2 + $0x1]]
    %s27 = sld [smem:[#allocation2 + $0x2]]
    %s28 = sld [smem:[#allocation2 + $0x3]]
    %s29 = sld [smem:[#allocation2 + $0x4]]
    %s30 = sld [smem:[#allocation2 + $0x5]]
    %s31 = sld [smem:[#allocation2 + $0x6]]
    %s32 = sld [smem:[#allocation2 + $0x7]]
    %s33 = sld [smem:[#allocation2 + $0x8]]
    %s34 = sld [smem:[#allocation2 + $0x9]]
    %s35 = sld [smem:[#allocation2 + $0xa]]
    %s36 = sld [smem:[#allocation2 + $0xb]]
    %s37 = sld [smem:[#allocation2 + $0xc]]
    %s38 = sld [smem:[#allocation2 + $0xd]]
    %s39 = sld [smem:[#allocation2 + $0xe]]
    %s40 = sld [smem:[#allocation2 + $0xf]]
    %s41 = sld [smem:[#allocation2 + $0x10]]
    %s42 = sld [smem:[#allocation2 + $0x11]]
    %s43 = sld [smem:[#allocation2 + $0x12]]
    %s44 = sld [smem:[#allocation2 + $0x13]]
    %s45 = sld [smem:[#allocation2 + $0x14]]
    %s46 = sld [smem:[#allocation2 + $0x15]]
    %s47 = sld [smem:[#allocation2 + $0x16]]
    %s48 = sld [smem:[#allocation2 + $0x17]]
    %s49 = sld [smem:[#allocation2 + $0x18]]
    %s50 = sld [smem:[#allocation2 + $0x19]]
    %s51 = sld [smem:[#allocation2 + $0x1a]]
    %s52 = sld [smem:[#allocation2 + $0x1b]]
    %s53 = sld [smem:[#allocation2 + $0x1c]]
    %s54 = sld [smem:[#allocation2 + $0x1d]]
    %s55 = sld [smem:[#allocation2 + $0x1e]]
    %s56 = sld [smem:[#allocation2 + $0x1f]]
    %s57 = sld [smem:[#allocation2 + $0x20]]
    %s58 = sld [smem:[#allocation2 + $0x21]]
    %s59 = sld [smem:[#allocation2 + $0x22]]
    %s60 = sld [smem:[#allocation2 + $0x23]]
    %s61 = sld [smem:[#allocation2 + $0x24]]
    %s62 = sld [smem:[#allocation2 + $0x25]]
    %s63 = sld [smem:[#allocation2 + $0x26]]
    %s64 = sld [smem:[#allocation2 + $0x27]]
    %s65 = sld [smem:[#allocation2 + $0x28]]
    %s66 = sld [smem:[#allocation2 + $0x29]]
    %s67 = sld [smem:[#allocation2 + $0x2a]]
    %s68 = sld [smem:[#allocation2 + $0x2b]]
    %s69 = sld [smem:[#allocation2 + $0x2c]]
    %s70 = sld [smem:[#allocation2 + $0x2d]]
    %s71 = sld [smem:[#allocation2 + $0x2e]]
    %s72 = sld [smem:[#allocation2 + $0x2f]]
    %s73 = sld [smem:[#allocation2 + $0x30]]
    %s74 = sld [smem:[#allocation2 + $0x31]]
    %s75 = sld [smem:[#allocation2 + $0x32]]
    %s76 = sld [smem:[#allocation2 + $0x33]]
    %s77 = sld [smem:[#allocation2 + $0x34]]
    %s78 = sld [smem:[#allocation2 + $0x35]]
    %s79 = sld [smem:[#allocation2 + $0x36]]
    %s80 = sld [smem:[#allocation2 + $0x37]]
    %s81 = sld [smem:[#allocation2 + $0x38]]
    %s82 = sld [smem:[#allocation2 + $0x39]]
    %s83 = sld [smem:[#allocation2 + $0x3a]]
    %s84 = sld [smem:[#allocation2 + $0x3b]]
    %s85 = sld [smem:[#allocation2 + $0x3c]]
    %v86 = vld [vmem:[%s0] sm:$0xff]
    %v87 = vstv %s85
    %v88 = vstv %s25
    %v89 = vmul.f32 %v86, %v88
    %v90 = vstv %s45
    %v91 = vadd.f32 %v89, %v90
    %v92 = vand.u32 2147483647, %v91
    %vm93 = vcmp.le.f32.partialorder %v92, 0.7853982
    %vm94 = vcmp.lt.s32.totalorder %v91, 0
    %v95 = vand.u32 %v91, 2139095040
    %v96 = vshrl.u32 %v95, 23
    %v97 = vsub.s32 %v96, 127
    %v98 = vand.u32 2147483647, %v91
    %v99 = vand.u32 %v98, 8388607
    %v100 = vor.u32 %v99, 8388608
    %v101 = vsub.s32 0, %v100
    %v102 = vadd.s32 %v97, 1
    %vm103 = vcmp.gt.s32.totalorder %v102, 0
    %v104 = vsel %vm103, %v102, 0
    %v105 = vshrl.u32 %v104, 5
    %v106 = vand.u32 %v104, 31
    %v107 = vsub.s32 32, %v106
    %v108 = vshrl.u32 683565275, %v107
    %v109 = vshll.u32 683565275, %v106
    %v110 = vshrl.u32 2475754826, %v107
    %v111 = vor.u32 %v109, %v110
    %v112 = vshll.u32 2475754826, %v106
    %v113 = vshrl.u32 2131351028, %v107
    %v114 = vor.u32 %v112, %v113
    %v115 = vshll.u32 2131351028, %v106
    %v116 = vshrl.u32 2102212464, %v107
    %v117 = vor.u32 %v115, %v116
    %v118 = vshll.u32 2102212464, %v106
    %v119 = vshrl.u32 920167782, %v107
    %v120 = vor.u32 %v118, %v119
    %v121 = vshll.u32 920167782, %v106
    %v122 = vshrl.u32 1326507024, %v107
    %v123 = vor.u32 %v121, %v122
    %vm124 = vcmp.lt.s32.totalorder %v105, 1
    %vm125 = vcmp.lt.s32.totalorder %v105, 2
    %vm126 = vcmp.lt.s32.totalorder %v105, 3
    %vm127 = vcmp.lt.s32.totalorder %v105, 4
    %v128 = vsel %vm124, %v108, %v111
    %v129 = vsel %vm127, %v117, 2102212464
    %v130 = vsel %vm126, %v114, %v129
    %v131 = vsel %vm125, %v128, %v130
    %v132 = vsel %vm124, %v111, %v114
    %v133 = vsel %vm127, %v120, 920167782
    %v134 = vsel %vm126, %v117, %v133
    %v135 = vsel %vm125, %v132, %v134
    %v136 = vsel %vm124, %v114, %v117
    %v137 = vsel %vm127, %v123, 1326507024
    %v138 = vsel %vm126, %v120, %v137
    %v139 = vsel %vm125, %v136, %v138
    %v140 = vshll.u32 %v100, 8
    %v141 = vmul.u32.u64.compose %v140, %v139
    %v142 = vextract.low.u32 %v141
    %v143 = vextract.high.u32 %v141
    %v144 = vmul.u32.u64.compose %v140, %v135
    %v145 = vextract.low.u32 %v144
    %v146 = vextract.high.u32 %v144
    %v147 = vmul.u32 %v140, %v131
    %v148 = vadd.s32 %v143, %v145
    %vm149 = vc.u32 %v143, %v145
    %v150 = vadd.s32 %v146, 1
    %v151 = vsel %vm149, %v150, %v146
    %v152 = vadd.s32 %v147, %v151
    %v153 = vadd.s32 %v152, 536870912
    %v154 = vshrl.u32 %v153, 30
    %v155 = vshll.u32 %v154, 30
    %v156 = vsub.s32 %v152, %v155
    %vm157 = vcmp.lt.s32.totalorder %v156, 0
    %v158 = vsub.s32 0, %v156
    %v159 = vsel %vm157, %v158, %v156
    %v160 = vclz %v159
    %v161 = vsub.s32 %v160, 2
    %vm162 = vcmp.gt.s32.totalorder 0, %v161
    %v163 = vsel %vm162, 0, %v161
    %v164 = vsub.s32 32, %v163
    %v165 = vshll.u32 %v156, %v163
    %v166 = vshrl.u32 %v148, %v164
    %v167 = vor.u32 %v165, %v166
    %v168 = vsub.s32 4294967266, %v163
    %v169 = vadd.s32 %v168, 127
    %v170 = vshll.u32 %v169, 23
    %v171 = vor.u32 4788187, %v170
    %v172 = vand.u32 2147483647, %v171
    %v174 = vcvt.s32.f32 %v167
    %v175 = vmul.f32 %v174, %v172
    %v176 = vxor.u32 %v175, 2147483648
    %v177 = vsel %vm94, %v176, %v175
    %v178 = vsub.s32 4, %v154
    %v179 = vsel %vm94, %v178, %v154
    %v180 = vsel %vm93, %v91, %v177
    %v181 = vsel %vm93, 0, %v179
    %v182 = vcosq.f32.pop %v180
    %v183 = vsinq.f32.pop %v180
    %vm184 = vweird.f32 %v91
    %v185 = vadd.s32 %v181, 3
    %v186 = vand.u32 %v185, 3
    %vm187 = vcmp.lt.s32.totalorder %v186, 2
    %vm188 = vcmp.eq.s32.totalorder %v186, 0
    %v189 = vxor.u32 %v183, 2147483648
    %v190 = vsel %vm188, %v182, %v189
    %vm191 = vcmp.eq.s32.totalorder %v186, 2
    %v192 = vxor.u32 %v182, 2147483648
    %v193 = vsel %vm191, %v192, %v183
    %v194 = vsel %vm187, %v190, %v193
    %v195 = vsel %vm184, nan, %v194
    %v196 = vstv %s65
    %v197 = vmul.f32 %v196, %v195
    %v198 = vadd.f32 %v87, %v197
    %v199 = vstv %s26
    %v200 = vmul.f32 %v86, %v199
    %v201 = vstv %s46
    %v202 = vadd.f32 %v200, %v201
    %v203 = vand.u32 2147483647, %v202
    %vm204 = vcmp.le.f32.partialorder %v203, 0.7853982
    %vm205 = vcmp.lt.s32.totalorder %v202, 0
    %v206 = vand.u32 %v202, 2139095040
    %v207 = vshrl.u32 %v206, 23
    %v208 = vsub.s32 %v207, 127
    %v209 = vand.u32 2147483647, %v202
    %v210 = vand.u32 %v209, 8388607
    %v211 = vor.u32 %v210, 8388608
    %v212 = vsub.s32 0, %v211
    %v213 = vadd.s32 %v208, 1
    %vm214 = vcmp.gt.s32.totalorder %v213, 0
    %v215 = vsel %vm214, %v213, 0
    %v216 = vshrl.u32 %v215, 5
    %v217 = vand.u32 %v215, 31
    %v218 = vsub.s32 32, %v217
    %v219 = vshrl.u32 683565275, %v218
    %v220 = vshll.u32 683565275, %v217
    %v221 = vshrl.u32 2475754826, %v218
    %v222 = vor.u32 %v220, %v221
    %v223 = vshll.u32 2475754826, %v217
    %v224 = vshrl.u32 2131351028, %v218
    %v225 = vor.u32 %v223, %v224
    %v226 = vshll.u32 2131351028, %v217
    %v227 = vshrl.u32 2102212464, %v218
    %v228 = vor.u32 %v226, %v227
    %v229 = vshll.u32 2102212464, %v217
    %v230 = vshrl.u32 920167782, %v218
    %v231 = vor.u32 %v229, %v230
    %v232 = vshll.u32 920167782, %v217
    %v233 = vshrl.u32 1326507024, %v218
    %v234 = vor.u32 %v232, %v233
    %vm235 = vcmp.lt.s32.totalorder %v216, 1
    %vm236 = vcmp.lt.s32.totalorder %v216, 2
    %vm237 = vcmp.lt.s32.totalorder %v216, 3
    %vm238 = vcmp.lt.s32.totalorder %v216, 4
    %v239 = vsel %vm235, %v219, %v222
    %v240 = vsel %vm238, %v228, 2102212464
    %v241 = vsel %vm237, %v225, %v240
    %v242 = vsel %vm236, %v239, %v241
    %v243 = vsel %vm235, %v222, %v225
    %v244 = vsel %vm238, %v231, 920167782
    %v245 = vsel %vm237, %v228, %v244
    %v246 = vsel %vm236, %v243, %v245
    %v247 = vsel %vm235, %v225, %v228
    %v248 = vsel %vm238, %v234, 1326507024
    %v249 = vsel %vm237, %v231, %v248
    %v250 = vsel %vm236, %v247, %v249
    %v251 = vshll.u32 %v211, 8
    %v252 = vmul.u32.u64.compose %v251, %v250
    %v253 = vextract.low.u32 %v252
    %v254 = vextract.high.u32 %v252
    %v255 = vmul.u32.u64.compose %v251, %v246
    %v256 = vextract.low.u32 %v255
    %v257 = vextract.high.u32 %v255
    %v258 = vmul.u32 %v251, %v242
    %v259 = vadd.s32 %v254, %v256
    %vm260 = vc.u32 %v254, %v256
    %v261 = vadd.s32 %v257, 1
    %v262 = vsel %vm260, %v261, %v257
    %v263 = vadd.s32 %v258, %v262
    %v264 = vadd.s32 %v263, 536870912
    %v265 = vshrl.u32 %v264, 30
    %v266 = vshll.u32 %v265, 30
    %v267 = vsub.s32 %v263, %v266
    %vm268 = vcmp.lt.s32.totalorder %v267, 0
    %v269 = vsub.s32 0, %v267
    %v270 = vsel %vm268, %v269, %v267
    %v271 = vclz %v270
    %v272 = vsub.s32 %v271, 2
    %vm273 = vcmp.gt.s32.totalorder 0, %v272
    %v274 = vsel %vm273, 0, %v272
    %v275 = vsub.s32 32, %v274
    %v276 = vshll.u32 %v267, %v274
    %v277 = vshrl.u32 %v259, %v275
    %v278 = vor.u32 %v276, %v277
    %v279 = vsub.s32 4294967266, %v274
    %v280 = vadd.s32 %v279, 127
    %v281 = vshll.u32 %v280, 23
    %v282 = vor.u32 4788187, %v281
    %v283 = vand.u32 2147483647, %v282
    %v285 = vcvt.s32.f32 %v278
    %v286 = vmul.f32 %v285, %v283
    %v287 = vxor.u32 %v286, 2147483648
    %v288 = vsel %vm205, %v287, %v286
    %v289 = vsub.s32 4, %v265
    %v290 = vsel %vm205, %v289, %v265
    %v291 = vsel %vm204, %v202, %v288
    %v292 = vsel %vm204, 0, %v290
    %v293 = vcosq.f32.pop %v291
    %v294 = vsinq.f32.pop %v291
    %vm295 = vweird.f32 %v202
    %v296 = vadd.s32 %v292, 3
    %v297 = vand.u32 %v296, 3
    %vm298 = vcmp.lt.s32.totalorder %v297, 2
    %vm299 = vcmp.eq.s32.totalorder %v297, 0
    %v300 = vxor.u32 %v294, 2147483648
    %v301 = vsel %vm299, %v293, %v300
    %vm302 = vcmp.eq.s32.totalorder %v297, 2
    %v303 = vxor.u32 %v293, 2147483648
    %v304 = vsel %vm302, %v303, %v294
    %v305 = vsel %vm298, %v301, %v304
    %v306 = vsel %vm295, nan, %v305
    %v307 = vstv %s66
    %v308 = vmul.f32 %v307, %v306
    %v309 = vadd.f32 %v308, 0.0
    %v310 = vstv %s27
    %v311 = vmul.f32 %v86, %v310
    %v312 = vstv %s47
    %v313 = vadd.f32 %v311, %v312
    %v314 = vand.u32 2147483647, %v313
    %vm315 = vcmp.le.f32.partialorder %v314, 0.7853982
    %vm316 = vcmp.lt.s32.totalorder %v313, 0
    %v317 = vand.u32 %v313, 2139095040
    %v318 = vshrl.u32 %v317, 23
    %v319 = vsub.s32 %v318, 127
    %v320 = vand.u32 2147483647, %v313
    %v321 = vand.u32 %v320, 8388607
    %v322 = vor.u32 %v321, 8388608
    %v323 = vsub.s32 0, %v322
    %v324 = vadd.s32 %v319, 1
    %vm325 = vcmp.gt.s32.totalorder %v324, 0
    %v326 = vsel %vm325, %v324, 0
    %v327 = vshrl.u32 %v326, 5
    %v328 = vand.u32 %v326, 31
    %v329 = vsub.s32 32, %v328
    %v330 = vshrl.u32 683565275, %v329
    %v331 = vshll.u32 683565275, %v328
    %v332 = vshrl.u32 2475754826, %v329
    %v333 = vor.u32 %v331, %v332
    %v334 = vshll.u32 2475754826, %v328
    %v335 = vshrl.u32 2131351028, %v329
    %v336 = vor.u32 %v334, %v335
    %v337 = vshll.u32 2131351028, %v328
    %v338 = vshrl.u32 2102212464, %v329
    %v339 = vor.u32 %v337, %v338
    %v340 = vshll.u32 2102212464, %v328
    %v341 = vshrl.u32 920167782, %v329
    %v342 = vor.u32 %v340, %v341
    %v343 = vshll.u32 920167782, %v328
    %v344 = vshrl.u32 1326507024, %v329
    %v345 = vor.u32 %v343, %v344
    %vm346 = vcmp.lt.s32.totalorder %v327, 1
    %vm347 = vcmp.lt.s32.totalorder %v327, 2
    %vm348 = vcmp.lt.s32.totalorder %v327, 3
    %vm349 = vcmp.lt.s32.totalorder %v327, 4
    %v350 = vsel %vm346, %v330, %v333
    %v351 = vsel %vm349, %v339, 2102212464
    %v352 = vsel %vm348, %v336, %v351
    %v353 = vsel %vm347, %v350, %v352
    %v354 = vsel %vm346, %v333, %v336
    %v355 = vsel %vm349, %v342, 920167782
    %v356 = vsel %vm348, %v339, %v355
    %v357 = vsel %vm347, %v354, %v356
    %v358 = vsel %vm346, %v336, %v339
    %v359 = vsel %vm349, %v345, 1326507024
    %v360 = vsel %vm348, %v342, %v359
    %v361 = vsel %vm347, %v358, %v360
    %v362 = vshll.u32 %v322, 8
    %v363 = vmul.u32.u64.compose %v362, %v361
    %v364 = vextract.low.u32 %v363
    %v365 = vextract.high.u32 %v363
    %v366 = vmul.u32.u64.compose %v362, %v357
    %v367 = vextract.low.u32 %v366
    %v368 = vextract.high.u32 %v366
    %v369 = vmul.u32 %v362, %v353
    %v370 = vadd.s32 %v365, %v367
    %vm371 = vc.u32 %v365, %v367
    %v372 = vadd.s32 %v368, 1
    %v373 = vsel %vm371, %v372, %v368
    %v374 = vadd.s32 %v369, %v373
    %v375 = vadd.s32 %v374, 536870912
    %v376 = vshrl.u32 %v375, 30
    %v377 = vshll.u32 %v376, 30
    %v378 = vsub.s32 %v374, %v377
    %vm379 = vcmp.lt.s32.totalorder %v378, 0
    %v380 = vsub.s32 0, %v378
    %v381 = vsel %vm379, %v380, %v378
    %v382 = vclz %v381
    %v383 = vsub.s32 %v382, 2
    %vm384 = vcmp.gt.s32.totalorder 0, %v383
    %v385 = vsel %vm384, 0, %v383
    %v386 = vsub.s32 32, %v385
    %v387 = vshll.u32 %v378, %v385
    %v388 = vshrl.u32 %v370, %v386
    %v389 = vor.u32 %v387, %v388
    %v390 = vsub.s32 4294967266, %v385
    %v391 = vadd.s32 %v390, 127
    %v392 = vshll.u32 %v391, 23
    %v393 = vor.u32 4788187, %v392
    %v394 = vand.u32 2147483647, %v393
    %v396 = vcvt.s32.f32 %v389
    %v397 = vmul.f32 %v396, %v394
    %v398 = vxor.u32 %v397, 2147483648
    %v399 = vsel %vm316, %v398, %v397
    %v400 = vsub.s32 4, %v376
    %v401 = vsel %vm316, %v400, %v376
    %v402 = vsel %vm315, %v313, %v399
    %v403 = vsel %vm315, 0, %v401
    %v404 = vcosq.f32.pop %v402
    %v405 = vsinq.f32.pop %v402
    %vm406 = vweird.f32 %v313
    %v407 = vadd.s32 %v403, 3
    %v408 = vand.u32 %v407, 3
    %vm409 = vcmp.lt.s32.totalorder %v408, 2
    %vm410 = vcmp.eq.s32.totalorder %v408, 0
    %v411 = vxor.u32 %v405, 2147483648
    %v412 = vsel %vm410, %v404, %v411
    %vm413 = vcmp.eq.s32.totalorder %v408, 2
    %v414 = vxor.u32 %v404, 2147483648
    %v415 = vsel %vm413, %v414, %v405
    %v416 = vsel %vm409, %v412, %v415
    %v417 = vsel %vm406, nan, %v416
    %v418 = vstv %s67
    %v419 = vmul.f32 %v418, %v417
    %v420 = vadd.f32 %v198, %v419
    %v421 = vstv %s28
    %v422 = vmul.f32 %v86, %v421
    %v423 = vstv %s48
    %v424 = vadd.f32 %v422, %v423
    %v425 = vand.u32 2147483647, %v424
    %vm426 = vcmp.le.f32.partialorder %v425, 0.7853982
    %vm427 = vcmp.lt.s32.totalorder %v424, 0
    %v428 = vand.u32 %v424, 2139095040
    %v429 = vshrl.u32 %v428, 23
    %v430 = vsub.s32 %v429, 127
    %v431 = vand.u32 2147483647, %v424
    %v432 = vand.u32 %v431, 8388607
    %v433 = vor.u32 %v432, 8388608
    %v434 = vsub.s32 0, %v433
    %v435 = vadd.s32 %v430, 1
    %vm436 = vcmp.gt.s32.totalorder %v435, 0
    %v437 = vsel %vm436, %v435, 0
    %v438 = vshrl.u32 %v437, 5
    %v439 = vand.u32 %v437, 31
    %v440 = vsub.s32 32, %v439
    %v441 = vshrl.u32 683565275, %v440
    %v442 = vshll.u32 683565275, %v439
    %v443 = vshrl.u32 2475754826, %v440
    %v444 = vor.u32 %v442, %v443
    %v445 = vshll.u32 2475754826, %v439
    %v446 = vshrl.u32 2131351028, %v440
    %v447 = vor.u32 %v445, %v446
    %v448 = vshll.u32 2131351028, %v439
    %v449 = vshrl.u32 2102212464, %v440
    %v450 = vor.u32 %v448, %v449
    %v451 = vshll.u32 2102212464, %v439
    %v452 = vshrl.u32 920167782, %v440
    %v453 = vor.u32 %v451, %v452
    %v454 = vshll.u32 920167782, %v439
    %v455 = vshrl.u32 1326507024, %v440
    %v456 = vor.u32 %v454, %v455
    %vm457 = vcmp.lt.s32.totalorder %v438, 1
    %vm458 = vcmp.lt.s32.totalorder %v438, 2
    %vm459 = vcmp.lt.s32.totalorder %v438, 3
    %vm460 = vcmp.lt.s32.totalorder %v438, 4
    %v461 = vsel %vm457, %v441, %v444
    %v462 = vsel %vm460, %v450, 2102212464
    %v463 = vsel %vm459, %v447, %v462
    %v464 = vsel %vm458, %v461, %v463
    %v465 = vsel %vm457, %v444, %v447
    %v466 = vsel %vm460, %v453, 920167782
    %v467 = vsel %vm459, %v450, %v466
    %v468 = vsel %vm458, %v465, %v467
    %v469 = vsel %vm457, %v447, %v450
    %v470 = vsel %vm460, %v456, 1326507024
    %v471 = vsel %vm459, %v453, %v470
    %v472 = vsel %vm458, %v469, %v471
    %v473 = vshll.u32 %v433, 8
    %v474 = vmul.u32.u64.compose %v473, %v472
    %v475 = vextract.low.u32 %v474
    %v476 = vextract.high.u32 %v474
    %v477 = vmul.u32.u64.compose %v473, %v468
    %v478 = vextract.low.u32 %v477
    %v479 = vextract.high.u32 %v477
    %v480 = vmul.u32 %v473, %v464
    %v481 = vadd.s32 %v476, %v478
    %vm482 = vc.u32 %v476, %v478
    %v483 = vadd.s32 %v479, 1
    %v484 = vsel %vm482, %v483, %v479
    %v485 = vadd.s32 %v480, %v484
    %v486 = vadd.s32 %v485, 536870912
    %v487 = vshrl.u32 %v486, 30
    %v488 = vshll.u32 %v487, 30
    %v489 = vsub.s32 %v485, %v488
    %vm490 = vcmp.lt.s32.totalorder %v489, 0
    %v491 = vsub.s32 0, %v489
    %v492 = vsel %vm490, %v491, %v489
    %v493 = vclz %v492
    %v494 = vsub.s32 %v493, 2
    %vm495 = vcmp.gt.s32.totalorder 0, %v494
    %v496 = vsel %vm495, 0, %v494
    %v497 = vsub.s32 32, %v496
    %v498 = vshll.u32 %v489, %v496
    %v499 = vshrl.u32 %v481, %v497
    %v500 = vor.u32 %v498, %v499
    %v501 = vsub.s32 4294967266, %v496
    %v502 = vadd.s32 %v501, 127
    %v503 = vshll.u32 %v502, 23
    %v504 = vor.u32 4788187, %v503
    %v505 = vand.u32 2147483647, %v504
    %v507 = vcvt.s32.f32 %v500
    %v508 = vmul.f32 %v507, %v505
    %v509 = vxor.u32 %v508, 2147483648
    %v510 = vsel %vm427, %v509, %v508
    %v511 = vsub.s32 4, %v487
    %v512 = vsel %vm427, %v511, %v487
    %v513 = vsel %vm426, %v424, %v510
    %v514 = vsel %vm426, 0, %v512
    %v515 = vcosq.f32.pop %v513
    %v516 = vsinq.f32.pop %v513
    %vm517 = vweird.f32 %v424
    %v518 = vadd.s32 %v514, 3
    %v519 = vand.u32 %v518, 3
    %vm520 = vcmp.lt.s32.totalorder %v519, 2
    %vm521 = vcmp.eq.s32.totalorder %v519, 0
    %v522 = vxor.u32 %v516, 2147483648
    %v523 = vsel %vm521, %v515, %v522
    %vm524 = vcmp.eq.s32.totalorder %v519, 2
    %v525 = vxor.u32 %v515, 2147483648
    %v526 = vsel %vm524, %v525, %v516
    %v527 = vsel %vm520, %v523, %v526
    %v528 = vsel %vm517, nan, %v527
    %v529 = vstv %s68
    %v530 = vmul.f32 %v529, %v528
    %v531 = vadd.f32 %v309, %v530
    %v532 = vstv %s29
    %v533 = vmul.f32 %v86, %v532
    %v534 = vstv %s49
    %v535 = vadd.f32 %v533, %v534
    %v536 = vand.u32 2147483647, %v535
    %vm537 = vcmp.le.f32.partialorder %v536, 0.7853982
    %vm538 = vcmp.lt.s32.totalorder %v535, 0
    %v539 = vand.u32 %v535, 2139095040
    %v540 = vshrl.u32 %v539, 23
    %v541 = vsub.s32 %v540, 127
    %v542 = vand.u32 2147483647, %v535
    %v543 = vand.u32 %v542, 8388607
    %v544 = vor.u32 %v543, 8388608
    %v545 = vsub.s32 0, %v544
    %v546 = vadd.s32 %v541, 1
    %vm547 = vcmp.gt.s32.totalorder %v546, 0
    %v548 = vsel %vm547, %v546, 0
    %v549 = vshrl.u32 %v548, 5
    %v550 = vand.u32 %v548, 31
    %v551 = vsub.s32 32, %v550
    %v552 = vshrl.u32 683565275, %v551
    %v553 = vshll.u32 683565275, %v550
    %v554 = vshrl.u32 2475754826, %v551
    %v555 = vor.u32 %v553, %v554
    %v556 = vshll.u32 2475754826, %v550
    %v557 = vshrl.u32 2131351028, %v551
    %v558 = vor.u32 %v556, %v557
    %v559 = vshll.u32 2131351028, %v550
    %v560 = vshrl.u32 2102212464, %v551
    %v561 = vor.u32 %v559, %v560
    %v562 = vshll.u32 2102212464, %v550
    %v563 = vshrl.u32 920167782, %v551
    %v564 = vor.u32 %v562, %v563
    %v565 = vshll.u32 920167782, %v550
    %v566 = vshrl.u32 1326507024, %v551
    %v567 = vor.u32 %v565, %v566
    %vm568 = vcmp.lt.s32.totalorder %v549, 1
    %vm569 = vcmp.lt.s32.totalorder %v549, 2
    %vm570 = vcmp.lt.s32.totalorder %v549, 3
    %vm571 = vcmp.lt.s32.totalorder %v549, 4
    %v572 = vsel %vm568, %v552, %v555
    %v573 = vsel %vm571, %v561, 2102212464
    %v574 = vsel %vm570, %v558, %v573
    %v575 = vsel %vm569, %v572, %v574
    %v576 = vsel %vm568, %v555, %v558
    %v577 = vsel %vm571, %v564, 920167782
    %v578 = vsel %vm570, %v561, %v577
    %v579 = vsel %vm569, %v576, %v578
    %v580 = vsel %vm568, %v558, %v561
    %v581 = vsel %vm571, %v567, 1326507024
    %v582 = vsel %vm570, %v564, %v581
    %v583 = vsel %vm569, %v580, %v582
    %v584 = vshll.u32 %v544, 8
    %v585 = vmul.u32.u64.compose %v584, %v583
    %v586 = vextract.low.u32 %v585
    %v587 = vextract.high.u32 %v585
    %v588 = vmul.u32.u64.compose %v584, %v579
    %v589 = vextract.low.u32 %v588
    %v590 = vextract.high.u32 %v588
    %v591 = vmul.u32 %v584, %v575
    %v592 = vadd.s32 %v587, %v589
    %vm593 = vc.u32 %v587, %v589
    %v594 = vadd.s32 %v590, 1
    %v595 = vsel %vm593, %v594, %v590
    %v596 = vadd.s32 %v591, %v595
    %v597 = vadd.s32 %v596, 536870912
    %v598 = vshrl.u32 %v597, 30
    %v599 = vshll.u32 %v598, 30
    %v600 = vsub.s32 %v596, %v599
    %vm601 = vcmp.lt.s32.totalorder %v600, 0
    %v602 = vsub.s32 0, %v600
    %v603 = vsel %vm601, %v602, %v600
    %v604 = vclz %v603
    %v605 = vsub.s32 %v604, 2
    %vm606 = vcmp.gt.s32.totalorder 0, %v605
    %v607 = vsel %vm606, 0, %v605
    %v608 = vsub.s32 32, %v607
    %v609 = vshll.u32 %v600, %v607
    %v610 = vshrl.u32 %v592, %v608
    %v611 = vor.u32 %v609, %v610
    %v612 = vsub.s32 4294967266, %v607
    %v613 = vadd.s32 %v612, 127
    %v614 = vshll.u32 %v613, 23
    %v615 = vor.u32 4788187, %v614
    %v616 = vand.u32 2147483647, %v615
    %v618 = vcvt.s32.f32 %v611
    %v619 = vmul.f32 %v618, %v616
    %v620 = vxor.u32 %v619, 2147483648
    %v621 = vsel %vm538, %v620, %v619
    %v622 = vsub.s32 4, %v598
    %v623 = vsel %vm538, %v622, %v598
    %v624 = vsel %vm537, %v535, %v621
    %v625 = vsel %vm537, 0, %v623
    %v626 = vcosq.f32.pop %v624
    %v627 = vsinq.f32.pop %v624
    %vm628 = vweird.f32 %v535
    %v629 = vadd.s32 %v625, 3
    %v630 = vand.u32 %v629, 3
    %vm631 = vcmp.lt.s32.totalorder %v630, 2
    %vm632 = vcmp.eq.s32.totalorder %v630, 0
    %v633 = vxor.u32 %v627, 2147483648
    %v634 = vsel %vm632, %v626, %v633
    %vm635 = vcmp.eq.s32.totalorder %v630, 2
    %v636 = vxor.u32 %v626, 2147483648
    %v637 = vsel %vm635, %v636, %v627
    %v638 = vsel %vm631, %v634, %v637
    %v639 = vsel %vm628, nan, %v638
    %v640 = vstv %s69
    %v641 = vmul.f32 %v640, %v639
    %v642 = vadd.f32 %v420, %v641
    %v643 = vstv %s30
    %v644 = vmul.f32 %v86, %v643
    %v645 = vstv %s50
    %v646 = vadd.f32 %v644, %v645
    %v647 = vand.u32 2147483647, %v646
    %vm648 = vcmp.le.f32.partialorder %v647, 0.7853982
    %vm649 = vcmp.lt.s32.totalorder %v646, 0
    %v650 = vand.u32 %v646, 2139095040
    %v651 = vshrl.u32 %v650, 23
    %v652 = vsub.s32 %v651, 127
    %v653 = vand.u32 2147483647, %v646
    %v654 = vand.u32 %v653, 8388607
    %v655 = vor.u32 %v654, 8388608
    %v656 = vsub.s32 0, %v655
    %v657 = vadd.s32 %v652, 1
    %vm658 = vcmp.gt.s32.totalorder %v657, 0
    %v659 = vsel %vm658, %v657, 0
    %v660 = vshrl.u32 %v659, 5
    %v661 = vand.u32 %v659, 31
    %v662 = vsub.s32 32, %v661
    %v663 = vshrl.u32 683565275, %v662
    %v664 = vshll.u32 683565275, %v661
    %v665 = vshrl.u32 2475754826, %v662
    %v666 = vor.u32 %v664, %v665
    %v667 = vshll.u32 2475754826, %v661
    %v668 = vshrl.u32 2131351028, %v662
    %v669 = vor.u32 %v667, %v668
    %v670 = vshll.u32 2131351028, %v661
    %v671 = vshrl.u32 2102212464, %v662
    %v672 = vor.u32 %v670, %v671
    %v673 = vshll.u32 2102212464, %v661
    %v674 = vshrl.u32 920167782, %v662
    %v675 = vor.u32 %v673, %v674
    %v676 = vshll.u32 920167782, %v661
    %v677 = vshrl.u32 1326507024, %v662
    %v678 = vor.u32 %v676, %v677
    %vm679 = vcmp.lt.s32.totalorder %v660, 1
    %vm680 = vcmp.lt.s32.totalorder %v660, 2
    %vm681 = vcmp.lt.s32.totalorder %v660, 3
    %vm682 = vcmp.lt.s32.totalorder %v660, 4
    %v683 = vsel %vm679, %v663, %v666
    %v684 = vsel %vm682, %v672, 2102212464
    %v685 = vsel %vm681, %v669, %v684
    %v686 = vsel %vm680, %v683, %v685
    %v687 = vsel %vm679, %v666, %v669
    %v688 = vsel %vm682, %v675, 920167782
    %v689 = vsel %vm681, %v672, %v688
    %v690 = vsel %vm680, %v687, %v689
    %v691 = vsel %vm679, %v669, %v672
    %v692 = vsel %vm682, %v678, 1326507024
    %v693 = vsel %vm681, %v675, %v692
    %v694 = vsel %vm680, %v691, %v693
    %v695 = vshll.u32 %v655, 8
    %v696 = vmul.u32.u64.compose %v695, %v694
    %v697 = vextract.low.u32 %v696
    %v698 = vextract.high.u32 %v696
    %v699 = vmul.u32.u64.compose %v695, %v690
    %v700 = vextract.low.u32 %v699
    %v701 = vextract.high.u32 %v699
    %v702 = vmul.u32 %v695, %v686
    %v703 = vadd.s32 %v698, %v700
    %vm704 = vc.u32 %v698, %v700
    %v705 = vadd.s32 %v701, 1
    %v706 = vsel %vm704, %v705, %v701
    %v707 = vadd.s32 %v702, %v706
    %v708 = vadd.s32 %v707, 536870912
    %v709 = vshrl.u32 %v708, 30
    %v710 = vshll.u32 %v709, 30
    %v711 = vsub.s32 %v707, %v710
    %vm712 = vcmp.lt.s32.totalorder %v711, 0
    %v713 = vsub.s32 0, %v711
    %v714 = vsel %vm712, %v713, %v711
    %v715 = vclz %v714
    %v716 = vsub.s32 %v715, 2
    %vm717 = vcmp.gt.s32.totalorder 0, %v716
    %v718 = vsel %vm717, 0, %v716
    %v719 = vsub.s32 32, %v718
    %v720 = vshll.u32 %v711, %v718
    %v721 = vshrl.u32 %v703, %v719
    %v722 = vor.u32 %v720, %v721
    %v723 = vsub.s32 4294967266, %v718
    %v724 = vadd.s32 %v723, 127
    %v725 = vshll.u32 %v724, 23
    %v726 = vor.u32 4788187, %v725
    %v727 = vand.u32 2147483647, %v726
    %v729 = vcvt.s32.f32 %v722
    %v730 = vmul.f32 %v729, %v727
    %v731 = vxor.u32 %v730, 2147483648
    %v732 = vsel %vm649, %v731, %v730
    %v733 = vsub.s32 4, %v709
    %v734 = vsel %vm649, %v733, %v709
    %v735 = vsel %vm648, %v646, %v732
    %v736 = vsel %vm648, 0, %v734
    %v737 = vcosq.f32.pop %v735
    %v738 = vsinq.f32.pop %v735
    %vm739 = vweird.f32 %v646
    %v740 = vadd.s32 %v736, 3
    %v741 = vand.u32 %v740, 3
    %vm742 = vcmp.lt.s32.totalorder %v741, 2
    %vm743 = vcmp.eq.s32.totalorder %v741, 0
    %v744 = vxor.u32 %v738, 2147483648
    %v745 = vsel %vm743, %v737, %v744
    %vm746 = vcmp.eq.s32.totalorder %v741, 2
    %v747 = vxor.u32 %v737, 2147483648
    %v748 = vsel %vm746, %v747, %v738
    %v749 = vsel %vm742, %v745, %v748
    %v750 = vsel %vm739, nan, %v749
    %v751 = vstv %s70
    %v752 = vmul.f32 %v751, %v750
    %v753 = vadd.f32 %v531, %v752
    %v754 = vstv %s31
    %v755 = vmul.f32 %v86, %v754
    %v756 = vstv %s51
    %v757 = vadd.f32 %v755, %v756
    %v758 = vand.u32 2147483647, %v757
    %vm759 = vcmp.le.f32.partialorder %v758, 0.7853982
    %vm760 = vcmp.lt.s32.totalorder %v757, 0
    %v761 = vand.u32 %v757, 2139095040
    %v762 = vshrl.u32 %v761, 23
    %v763 = vsub.s32 %v762, 127
    %v764 = vand.u32 2147483647, %v757
    %v765 = vand.u32 %v764, 8388607
    %v766 = vor.u32 %v765, 8388608
    %v767 = vsub.s32 0, %v766
    %v768 = vadd.s32 %v763, 1
    %vm769 = vcmp.gt.s32.totalorder %v768, 0
    %v770 = vsel %vm769, %v768, 0
    %v771 = vshrl.u32 %v770, 5
    %v772 = vand.u32 %v770, 31
    %v773 = vsub.s32 32, %v772
    %v774 = vshrl.u32 683565275, %v773
    %v775 = vshll.u32 683565275, %v772
    %v776 = vshrl.u32 2475754826, %v773
    %v777 = vor.u32 %v775, %v776
    %v778 = vshll.u32 2475754826, %v772
    %v779 = vshrl.u32 2131351028, %v773
    %v780 = vor.u32 %v778, %v779
    %v781 = vshll.u32 2131351028, %v772
    %v782 = vshrl.u32 2102212464, %v773
    %v783 = vor.u32 %v781, %v782
    %v784 = vshll.u32 2102212464, %v772
    %v785 = vshrl.u32 920167782, %v773
    %v786 = vor.u32 %v784, %v785
    %v787 = vshll.u32 920167782, %v772
    %v788 = vshrl.u32 1326507024, %v773
    %v789 = vor.u32 %v787, %v788
    %vm790 = vcmp.lt.s32.totalorder %v771, 1
    %vm791 = vcmp.lt.s32.totalorder %v771, 2
    %vm792 = vcmp.lt.s32.totalorder %v771, 3
    %vm793 = vcmp.lt.s32.totalorder %v771, 4
    %v794 = vsel %vm790, %v774, %v777
    %v795 = vsel %vm793, %v783, 2102212464
    %v796 = vsel %vm792, %v780, %v795
    %v797 = vsel %vm791, %v794, %v796
    %v798 = vsel %vm790, %v777, %v780
    %v799 = vsel %vm793, %v786, 920167782
    %v800 = vsel %vm792, %v783, %v799
    %v801 = vsel %vm791, %v798, %v800
    %v802 = vsel %vm790, %v780, %v783
    %v803 = vsel %vm793, %v789, 1326507024
    %v804 = vsel %vm792, %v786, %v803
    %v805 = vsel %vm791, %v802, %v804
    %v806 = vshll.u32 %v766, 8
    %v807 = vmul.u32.u64.compose %v806, %v805
    %v808 = vextract.low.u32 %v807
    %v809 = vextract.high.u32 %v807
    %v810 = vmul.u32.u64.compose %v806, %v801
    %v811 = vextract.low.u32 %v810
    %v812 = vextract.high.u32 %v810
    %v813 = vmul.u32 %v806, %v797
    %v814 = vadd.s32 %v809, %v811
    %vm815 = vc.u32 %v809, %v811
    %v816 = vadd.s32 %v812, 1
    %v817 = vsel %vm815, %v816, %v812
    %v818 = vadd.s32 %v813, %v817
    %v819 = vadd.s32 %v818, 536870912
    %v820 = vshrl.u32 %v819, 30
    %v821 = vshll.u32 %v820, 30
    %v822 = vsub.s32 %v818, %v821
    %vm823 = vcmp.lt.s32.totalorder %v822, 0
    %v824 = vsub.s32 0, %v822
    %v825 = vsel %vm823, %v824, %v822
    %v826 = vclz %v825
    %v827 = vsub.s32 %v826, 2
    %vm828 = vcmp.gt.s32.totalorder 0, %v827
    %v829 = vsel %vm828, 0, %v827
    %v830 = vsub.s32 32, %v829
    %v831 = vshll.u32 %v822, %v829
    %v832 = vshrl.u32 %v814, %v830
    %v833 = vor.u32 %v831, %v832
    %v834 = vsub.s32 4294967266, %v829
    %v835 = vadd.s32 %v834, 127
    %v836 = vshll.u32 %v835, 23
    %v837 = vor.u32 4788187, %v836
    %v838 = vand.u32 2147483647, %v837
    %v840 = vcvt.s32.f32 %v833
    %v841 = vmul.f32 %v840, %v838
    %v842 = vxor.u32 %v841, 2147483648
    %v843 = vsel %vm760, %v842, %v841
    %v844 = vsub.s32 4, %v820
    %v845 = vsel %vm760, %v844, %v820
    %v846 = vsel %vm759, %v757, %v843
    %v847 = vsel %vm759, 0, %v845
    %v848 = vcosq.f32.pop %v846
    %v849 = vsinq.f32.pop %v846
    %vm850 = vweird.f32 %v757
    %v851 = vadd.s32 %v847, 3
    %v852 = vand.u32 %v851, 3
    %vm853 = vcmp.lt.s32.totalorder %v852, 2
    %vm854 = vcmp.eq.s32.totalorder %v852, 0
    %v855 = vxor.u32 %v849, 2147483648
    %v856 = vsel %vm854, %v848, %v855
    %vm857 = vcmp.eq.s32.totalorder %v852, 2
    %v858 = vxor.u32 %v848, 2147483648
    %v859 = vsel %vm857, %v858, %v849
    %v860 = vsel %vm853, %v856, %v859
    %v861 = vsel %vm850, nan, %v860
    %v862 = vstv %s71
    %v863 = vmul.f32 %v862, %v861
    %v864 = vadd.f32 %v642, %v863
    %v865 = vstv %s32
    %v866 = vmul.f32 %v86, %v865
    %v867 = vstv %s52
    %v868 = vadd.f32 %v866, %v867
    %v869 = vand.u32 2147483647, %v868
    %vm870 = vcmp.le.f32.partialorder %v869, 0.7853982
    %vm871 = vcmp.lt.s32.totalorder %v868, 0
    %v872 = vand.u32 %v868, 2139095040
    %v873 = vshrl.u32 %v872, 23
    %v874 = vsub.s32 %v873, 127
    %v875 = vand.u32 2147483647, %v868
    %v876 = vand.u32 %v875, 8388607
    %v877 = vor.u32 %v876, 8388608
    %v878 = vsub.s32 0, %v877
    %v879 = vadd.s32 %v874, 1
    %vm880 = vcmp.gt.s32.totalorder %v879, 0
    %v881 = vsel %vm880, %v879, 0
    %v882 = vshrl.u32 %v881, 5
    %v883 = vand.u32 %v881, 31
    %v884 = vsub.s32 32, %v883
    %v885 = vshrl.u32 683565275, %v884
    %v886 = vshll.u32 683565275, %v883
    %v887 = vshrl.u32 2475754826, %v884
    %v888 = vor.u32 %v886, %v887
    %v889 = vshll.u32 2475754826, %v883
    %v890 = vshrl.u32 2131351028, %v884
    %v891 = vor.u32 %v889, %v890
    %v892 = vshll.u32 2131351028, %v883
    %v893 = vshrl.u32 2102212464, %v884
    %v894 = vor.u32 %v892, %v893
    %v895 = vshll.u32 2102212464, %v883
    %v896 = vshrl.u32 920167782, %v884
    %v897 = vor.u32 %v895, %v896
    %v898 = vshll.u32 920167782, %v883
    %v899 = vshrl.u32 1326507024, %v884
    %v900 = vor.u32 %v898, %v899
    %vm901 = vcmp.lt.s32.totalorder %v882, 1
    %vm902 = vcmp.lt.s32.totalorder %v882, 2
    %vm903 = vcmp.lt.s32.totalorder %v882, 3
    %vm904 = vcmp.lt.s32.totalorder %v882, 4
    %v905 = vsel %vm901, %v885, %v888
    %v906 = vsel %vm904, %v894, 2102212464
    %v907 = vsel %vm903, %v891, %v906
    %v908 = vsel %vm902, %v905, %v907
    %v909 = vsel %vm901, %v888, %v891
    %v910 = vsel %vm904, %v897, 920167782
    %v911 = vsel %vm903, %v894, %v910
    %v912 = vsel %vm902, %v909, %v911
    %v913 = vsel %vm901, %v891, %v894
    %v914 = vsel %vm904, %v900, 1326507024
    %v915 = vsel %vm903, %v897, %v914
    %v916 = vsel %vm902, %v913, %v915
    %v917 = vshll.u32 %v877, 8
    %v918 = vmul.u32.u64.compose %v917, %v916
    %v919 = vextract.low.u32 %v918
    %v920 = vextract.high.u32 %v918
    %v921 = vmul.u32.u64.compose %v917, %v912
    %v922 = vextract.low.u32 %v921
    %v923 = vextract.high.u32 %v921
    %v924 = vmul.u32 %v917, %v908
    %v925 = vadd.s32 %v920, %v922
    %vm926 = vc.u32 %v920, %v922
    %v927 = vadd.s32 %v923, 1
    %v928 = vsel %vm926, %v927, %v923
    %v929 = vadd.s32 %v924, %v928
    %v930 = vadd.s32 %v929, 536870912
    %v931 = vshrl.u32 %v930, 30
    %v932 = vshll.u32 %v931, 30
    %v933 = vsub.s32 %v929, %v932
    %vm934 = vcmp.lt.s32.totalorder %v933, 0
    %v935 = vsub.s32 0, %v933
    %v936 = vsel %vm934, %v935, %v933
    %v937 = vclz %v936
    %v938 = vsub.s32 %v937, 2
    %vm939 = vcmp.gt.s32.totalorder 0, %v938
    %v940 = vsel %vm939, 0, %v938
    %v941 = vsub.s32 32, %v940
    %v942 = vshll.u32 %v933, %v940
    %v943 = vshrl.u32 %v925, %v941
    %v944 = vor.u32 %v942, %v943
    %v945 = vsub.s32 4294967266, %v940
    %v946 = vadd.s32 %v945, 127
    %v947 = vshll.u32 %v946, 23
    %v948 = vor.u32 4788187, %v947
    %v949 = vand.u32 2147483647, %v948
    %v951 = vcvt.s32.f32 %v944
    %v952 = vmul.f32 %v951, %v949
    %v953 = vxor.u32 %v952, 2147483648
    %v954 = vsel %vm871, %v953, %v952
    %v955 = vsub.s32 4, %v931
    %v956 = vsel %vm871, %v955, %v931
    %v957 = vsel %vm870, %v868, %v954
    %v958 = vsel %vm870, 0, %v956
    %v959 = vcosq.f32.pop %v957
    %v960 = vsinq.f32.pop %v957
    %vm961 = vweird.f32 %v868
    %v962 = vadd.s32 %v958, 3
    %v963 = vand.u32 %v962, 3
    %vm964 = vcmp.lt.s32.totalorder %v963, 2
    %vm965 = vcmp.eq.s32.totalorder %v963, 0
    %v966 = vxor.u32 %v960, 2147483648
    %v967 = vsel %vm965, %v959, %v966
    %vm968 = vcmp.eq.s32.totalorder %v963, 2
    %v969 = vxor.u32 %v959, 2147483648
    %v970 = vsel %vm968, %v969, %v960
    %v971 = vsel %vm964, %v967, %v970
    %v972 = vsel %vm961, nan, %v971
    %v973 = vstv %s72
    %v974 = vmul.f32 %v973, %v972
    %v975 = vadd.f32 %v753, %v974
    %v976 = vstv %s33
    %v977 = vmul.f32 %v86, %v976
    %v978 = vstv %s53
    %v979 = vadd.f32 %v977, %v978
    %v980 = vand.u32 2147483647, %v979
    %vm981 = vcmp.le.f32.partialorder %v980, 0.7853982
    %vm982 = vcmp.lt.s32.totalorder %v979, 0
    %v983 = vand.u32 %v979, 2139095040
    %v984 = vshrl.u32 %v983, 23
    %v985 = vsub.s32 %v984, 127
    %v986 = vand.u32 2147483647, %v979
    %v987 = vand.u32 %v986, 8388607
    %v988 = vor.u32 %v987, 8388608
    %v989 = vsub.s32 0, %v988
    %v990 = vadd.s32 %v985, 1
    %vm991 = vcmp.gt.s32.totalorder %v990, 0
    %v992 = vsel %vm991, %v990, 0
    %v993 = vshrl.u32 %v992, 5
    %v994 = vand.u32 %v992, 31
    %v995 = vsub.s32 32, %v994
    %v996 = vshrl.u32 683565275, %v995
    %v997 = vshll.u32 683565275, %v994
    %v998 = vshrl.u32 2475754826, %v995
    %v999 = vor.u32 %v997, %v998
    %v1000 = vshll.u32 2475754826, %v994
    %v1001 = vshrl.u32 2131351028, %v995
    %v1002 = vor.u32 %v1000, %v1001
    %v1003 = vshll.u32 2131351028, %v994
    %v1004 = vshrl.u32 2102212464, %v995
    %v1005 = vor.u32 %v1003, %v1004
    %v1006 = vshll.u32 2102212464, %v994
    %v1007 = vshrl.u32 920167782, %v995
    %v1008 = vor.u32 %v1006, %v1007
    %v1009 = vshll.u32 920167782, %v994
    %v1010 = vshrl.u32 1326507024, %v995
    %v1011 = vor.u32 %v1009, %v1010
    %vm1012 = vcmp.lt.s32.totalorder %v993, 1
    %vm1013 = vcmp.lt.s32.totalorder %v993, 2
    %vm1014 = vcmp.lt.s32.totalorder %v993, 3
    %vm1015 = vcmp.lt.s32.totalorder %v993, 4
    %v1016 = vsel %vm1012, %v996, %v999
    %v1017 = vsel %vm1015, %v1005, 2102212464
    %v1018 = vsel %vm1014, %v1002, %v1017
    %v1019 = vsel %vm1013, %v1016, %v1018
    %v1020 = vsel %vm1012, %v999, %v1002
    %v1021 = vsel %vm1015, %v1008, 920167782
    %v1022 = vsel %vm1014, %v1005, %v1021
    %v1023 = vsel %vm1013, %v1020, %v1022
    %v1024 = vsel %vm1012, %v1002, %v1005
    %v1025 = vsel %vm1015, %v1011, 1326507024
    %v1026 = vsel %vm1014, %v1008, %v1025
    %v1027 = vsel %vm1013, %v1024, %v1026
    %v1028 = vshll.u32 %v988, 8
    %v1029 = vmul.u32.u64.compose %v1028, %v1027
    %v1030 = vextract.low.u32 %v1029
    %v1031 = vextract.high.u32 %v1029
    %v1032 = vmul.u32.u64.compose %v1028, %v1023
    %v1033 = vextract.low.u32 %v1032
    %v1034 = vextract.high.u32 %v1032
    %v1035 = vmul.u32 %v1028, %v1019
    %v1036 = vadd.s32 %v1031, %v1033
    %vm1037 = vc.u32 %v1031, %v1033
    %v1038 = vadd.s32 %v1034, 1
    %v1039 = vsel %vm1037, %v1038, %v1034
    %v1040 = vadd.s32 %v1035, %v1039
    %v1041 = vadd.s32 %v1040, 536870912
    %v1042 = vshrl.u32 %v1041, 30
    %v1043 = vshll.u32 %v1042, 30
    %v1044 = vsub.s32 %v1040, %v1043
    %vm1045 = vcmp.lt.s32.totalorder %v1044, 0
    %v1046 = vsub.s32 0, %v1044
    %v1047 = vsel %vm1045, %v1046, %v1044
    %v1048 = vclz %v1047
    %v1049 = vsub.s32 %v1048, 2
    %vm1050 = vcmp.gt.s32.totalorder 0, %v1049
    %v1051 = vsel %vm1050, 0, %v1049
    %v1052 = vsub.s32 32, %v1051
    %v1053 = vshll.u32 %v1044, %v1051
    %v1054 = vshrl.u32 %v1036, %v1052
    %v1055 = vor.u32 %v1053, %v1054
    %v1056 = vsub.s32 4294967266, %v1051
    %v1057 = vadd.s32 %v1056, 127
    %v1058 = vshll.u32 %v1057, 23
    %v1059 = vor.u32 4788187, %v1058
    %v1060 = vand.u32 2147483647, %v1059
    %v1062 = vcvt.s32.f32 %v1055
    %v1063 = vmul.f32 %v1062, %v1060
    %v1064 = vxor.u32 %v1063, 2147483648
    %v1065 = vsel %vm982, %v1064, %v1063
    %v1066 = vsub.s32 4, %v1042
    %v1067 = vsel %vm982, %v1066, %v1042
    %v1068 = vsel %vm981, %v979, %v1065
    %v1069 = vsel %vm981, 0, %v1067
    %v1070 = vcosq.f32.pop %v1068
    %v1071 = vsinq.f32.pop %v1068
    %vm1072 = vweird.f32 %v979
    %v1073 = vadd.s32 %v1069, 3
    %v1074 = vand.u32 %v1073, 3
    %vm1075 = vcmp.lt.s32.totalorder %v1074, 2
    %vm1076 = vcmp.eq.s32.totalorder %v1074, 0
    %v1077 = vxor.u32 %v1071, 2147483648
    %v1078 = vsel %vm1076, %v1070, %v1077
    %vm1079 = vcmp.eq.s32.totalorder %v1074, 2
    %v1080 = vxor.u32 %v1070, 2147483648
    %v1081 = vsel %vm1079, %v1080, %v1071
    %v1082 = vsel %vm1075, %v1078, %v1081
    %v1083 = vsel %vm1072, nan, %v1082
    %v1084 = vstv %s73
    %v1085 = vmul.f32 %v1084, %v1083
    %v1086 = vadd.f32 %v864, %v1085
    %v1087 = vstv %s34
    %v1088 = vmul.f32 %v86, %v1087
    %v1089 = vstv %s54
    %v1090 = vadd.f32 %v1088, %v1089
    %v1091 = vand.u32 2147483647, %v1090
    %vm1092 = vcmp.le.f32.partialorder %v1091, 0.7853982
    %vm1093 = vcmp.lt.s32.totalorder %v1090, 0
    %v1094 = vand.u32 %v1090, 2139095040
    %v1095 = vshrl.u32 %v1094, 23
    %v1096 = vsub.s32 %v1095, 127
    %v1097 = vand.u32 2147483647, %v1090
    %v1098 = vand.u32 %v1097, 8388607
    %v1099 = vor.u32 %v1098, 8388608
    %v1100 = vsub.s32 0, %v1099
    %v1101 = vadd.s32 %v1096, 1
    %vm1102 = vcmp.gt.s32.totalorder %v1101, 0
    %v1103 = vsel %vm1102, %v1101, 0
    %v1104 = vshrl.u32 %v1103, 5
    %v1105 = vand.u32 %v1103, 31
    %v1106 = vsub.s32 32, %v1105
    %v1107 = vshrl.u32 683565275, %v1106
    %v1108 = vshll.u32 683565275, %v1105
    %v1109 = vshrl.u32 2475754826, %v1106
    %v1110 = vor.u32 %v1108, %v1109
    %v1111 = vshll.u32 2475754826, %v1105
    %v1112 = vshrl.u32 2131351028, %v1106
    %v1113 = vor.u32 %v1111, %v1112
    %v1114 = vshll.u32 2131351028, %v1105
    %v1115 = vshrl.u32 2102212464, %v1106
    %v1116 = vor.u32 %v1114, %v1115
    %v1117 = vshll.u32 2102212464, %v1105
    %v1118 = vshrl.u32 920167782, %v1106
    %v1119 = vor.u32 %v1117, %v1118
    %v1120 = vshll.u32 920167782, %v1105
    %v1121 = vshrl.u32 1326507024, %v1106
    %v1122 = vor.u32 %v1120, %v1121
    %vm1123 = vcmp.lt.s32.totalorder %v1104, 1
    %vm1124 = vcmp.lt.s32.totalorder %v1104, 2
    %vm1125 = vcmp.lt.s32.totalorder %v1104, 3
    %vm1126 = vcmp.lt.s32.totalorder %v1104, 4
    %v1127 = vsel %vm1123, %v1107, %v1110
    %v1128 = vsel %vm1126, %v1116, 2102212464
    %v1129 = vsel %vm1125, %v1113, %v1128
    %v1130 = vsel %vm1124, %v1127, %v1129
    %v1131 = vsel %vm1123, %v1110, %v1113
    %v1132 = vsel %vm1126, %v1119, 920167782
    %v1133 = vsel %vm1125, %v1116, %v1132
    %v1134 = vsel %vm1124, %v1131, %v1133
    %v1135 = vsel %vm1123, %v1113, %v1116
    %v1136 = vsel %vm1126, %v1122, 1326507024
    %v1137 = vsel %vm1125, %v1119, %v1136
    %v1138 = vsel %vm1124, %v1135, %v1137
    %v1139 = vshll.u32 %v1099, 8
    %v1140 = vmul.u32.u64.compose %v1139, %v1138
    %v1141 = vextract.low.u32 %v1140
    %v1142 = vextract.high.u32 %v1140
    %v1143 = vmul.u32.u64.compose %v1139, %v1134
    %v1144 = vextract.low.u32 %v1143
    %v1145 = vextract.high.u32 %v1143
    %v1146 = vmul.u32 %v1139, %v1130
    %v1147 = vadd.s32 %v1142, %v1144
    %vm1148 = vc.u32 %v1142, %v1144
    %v1149 = vadd.s32 %v1145, 1
    %v1150 = vsel %vm1148, %v1149, %v1145
    %v1151 = vadd.s32 %v1146, %v1150
    %v1152 = vadd.s32 %v1151, 536870912
    %v1153 = vshrl.u32 %v1152, 30
    %v1154 = vshll.u32 %v1153, 30
    %v1155 = vsub.s32 %v1151, %v1154
    %vm1156 = vcmp.lt.s32.totalorder %v1155, 0
    %v1157 = vsub.s32 0, %v1155
    %v1158 = vsel %vm1156, %v1157, %v1155
    %v1159 = vclz %v1158
    %v1160 = vsub.s32 %v1159, 2
    %vm1161 = vcmp.gt.s32.totalorder 0, %v1160
    %v1162 = vsel %vm1161, 0, %v1160
    %v1163 = vsub.s32 32, %v1162
    %v1164 = vshll.u32 %v1155, %v1162
    %v1165 = vshrl.u32 %v1147, %v1163
    %v1166 = vor.u32 %v1164, %v1165
    %v1167 = vsub.s32 4294967266, %v1162
    %v1168 = vadd.s32 %v1167, 127
    %v1169 = vshll.u32 %v1168, 23
    %v1170 = vor.u32 4788187, %v1169
    %v1171 = vand.u32 2147483647, %v1170
    %v1173 = vcvt.s32.f32 %v1166
    %v1174 = vmul.f32 %v1173, %v1171
    %v1175 = vxor.u32 %v1174, 2147483648
    %v1176 = vsel %vm1093, %v1175, %v1174
    %v1177 = vsub.s32 4, %v1153
    %v1178 = vsel %vm1093, %v1177, %v1153
    %v1179 = vsel %vm1092, %v1090, %v1176
    %v1180 = vsel %vm1092, 0, %v1178
    %v1181 = vcosq.f32.pop %v1179
    %v1182 = vsinq.f32.pop %v1179
    %vm1183 = vweird.f32 %v1090
    %v1184 = vadd.s32 %v1180, 3
    %v1185 = vand.u32 %v1184, 3
    %vm1186 = vcmp.lt.s32.totalorder %v1185, 2
    %vm1187 = vcmp.eq.s32.totalorder %v1185, 0
    %v1188 = vxor.u32 %v1182, 2147483648
    %v1189 = vsel %vm1187, %v1181, %v1188
    %vm1190 = vcmp.eq.s32.totalorder %v1185, 2
    %v1191 = vxor.u32 %v1181, 2147483648
    %v1192 = vsel %vm1190, %v1191, %v1182
    %v1193 = vsel %vm1186, %v1189, %v1192
    %v1194 = vsel %vm1183, nan, %v1193
    %v1195 = vstv %s74
    %v1196 = vmul.f32 %v1195, %v1194
    %v1197 = vadd.f32 %v975, %v1196
    %v1198 = vstv %s35
    %v1199 = vmul.f32 %v86, %v1198
    %v1200 = vstv %s55
    %v1201 = vadd.f32 %v1199, %v1200
    %v1202 = vand.u32 2147483647, %v1201
    %vm1203 = vcmp.le.f32.partialorder %v1202, 0.7853982
    %vm1204 = vcmp.lt.s32.totalorder %v1201, 0
    %v1205 = vand.u32 %v1201, 2139095040
    %v1206 = vshrl.u32 %v1205, 23
    %v1207 = vsub.s32 %v1206, 127
    %v1208 = vand.u32 2147483647, %v1201
    %v1209 = vand.u32 %v1208, 8388607
    %v1210 = vor.u32 %v1209, 8388608
    %v1211 = vsub.s32 0, %v1210
    %v1212 = vadd.s32 %v1207, 1
    %vm1213 = vcmp.gt.s32.totalorder %v1212, 0
    %v1214 = vsel %vm1213, %v1212, 0
    %v1215 = vshrl.u32 %v1214, 5
    %v1216 = vand.u32 %v1214, 31
    %v1217 = vsub.s32 32, %v1216
    %v1218 = vshrl.u32 683565275, %v1217
    %v1219 = vshll.u32 683565275, %v1216
    %v1220 = vshrl.u32 2475754826, %v1217
    %v1221 = vor.u32 %v1219, %v1220
    %v1222 = vshll.u32 2475754826, %v1216
    %v1223 = vshrl.u32 2131351028, %v1217
    %v1224 = vor.u32 %v1222, %v1223
    %v1225 = vshll.u32 2131351028, %v1216
    %v1226 = vshrl.u32 2102212464, %v1217
    %v1227 = vor.u32 %v1225, %v1226
    %v1228 = vshll.u32 2102212464, %v1216
    %v1229 = vshrl.u32 920167782, %v1217
    %v1230 = vor.u32 %v1228, %v1229
    %v1231 = vshll.u32 920167782, %v1216
    %v1232 = vshrl.u32 1326507024, %v1217
    %v1233 = vor.u32 %v1231, %v1232
    %vm1234 = vcmp.lt.s32.totalorder %v1215, 1
    %vm1235 = vcmp.lt.s32.totalorder %v1215, 2
    %vm1236 = vcmp.lt.s32.totalorder %v1215, 3
    %vm1237 = vcmp.lt.s32.totalorder %v1215, 4
    %v1238 = vsel %vm1234, %v1218, %v1221
    %v1239 = vsel %vm1237, %v1227, 2102212464
    %v1240 = vsel %vm1236, %v1224, %v1239
    %v1241 = vsel %vm1235, %v1238, %v1240
    %v1242 = vsel %vm1234, %v1221, %v1224
    %v1243 = vsel %vm1237, %v1230, 920167782
    %v1244 = vsel %vm1236, %v1227, %v1243
    %v1245 = vsel %vm1235, %v1242, %v1244
    %v1246 = vsel %vm1234, %v1224, %v1227
    %v1247 = vsel %vm1237, %v1233, 1326507024
    %v1248 = vsel %vm1236, %v1230, %v1247
    %v1249 = vsel %vm1235, %v1246, %v1248
    %v1250 = vshll.u32 %v1210, 8
    %v1251 = vmul.u32.u64.compose %v1250, %v1249
    %v1252 = vextract.low.u32 %v1251
    %v1253 = vextract.high.u32 %v1251
    %v1254 = vmul.u32.u64.compose %v1250, %v1245
    %v1255 = vextract.low.u32 %v1254
    %v1256 = vextract.high.u32 %v1254
    %v1257 = vmul.u32 %v1250, %v1241
    %v1258 = vadd.s32 %v1253, %v1255
    %vm1259 = vc.u32 %v1253, %v1255
    %v1260 = vadd.s32 %v1256, 1
    %v1261 = vsel %vm1259, %v1260, %v1256
    %v1262 = vadd.s32 %v1257, %v1261
    %v1263 = vadd.s32 %v1262, 536870912
    %v1264 = vshrl.u32 %v1263, 30
    %v1265 = vshll.u32 %v1264, 30
    %v1266 = vsub.s32 %v1262, %v1265
    %vm1267 = vcmp.lt.s32.totalorder %v1266, 0
    %v1268 = vsub.s32 0, %v1266
    %v1269 = vsel %vm1267, %v1268, %v1266
    %v1270 = vclz %v1269
    %v1271 = vsub.s32 %v1270, 2
    %vm1272 = vcmp.gt.s32.totalorder 0, %v1271
    %v1273 = vsel %vm1272, 0, %v1271
    %v1274 = vsub.s32 32, %v1273
    %v1275 = vshll.u32 %v1266, %v1273
    %v1276 = vshrl.u32 %v1258, %v1274
    %v1277 = vor.u32 %v1275, %v1276
    %v1278 = vsub.s32 4294967266, %v1273
    %v1279 = vadd.s32 %v1278, 127
    %v1280 = vshll.u32 %v1279, 23
    %v1281 = vor.u32 4788187, %v1280
    %v1282 = vand.u32 2147483647, %v1281
    %v1284 = vcvt.s32.f32 %v1277
    %v1285 = vmul.f32 %v1284, %v1282
    %v1286 = vxor.u32 %v1285, 2147483648
    %v1287 = vsel %vm1204, %v1286, %v1285
    %v1288 = vsub.s32 4, %v1264
    %v1289 = vsel %vm1204, %v1288, %v1264
    %v1290 = vsel %vm1203, %v1201, %v1287
    %v1291 = vsel %vm1203, 0, %v1289
    %v1292 = vcosq.f32.pop %v1290
    %v1293 = vsinq.f32.pop %v1290
    %vm1294 = vweird.f32 %v1201
    %v1295 = vadd.s32 %v1291, 3
    %v1296 = vand.u32 %v1295, 3
    %vm1297 = vcmp.lt.s32.totalorder %v1296, 2
    %vm1298 = vcmp.eq.s32.totalorder %v1296, 0
    %v1299 = vxor.u32 %v1293, 2147483648
    %v1300 = vsel %vm1298, %v1292, %v1299
    %vm1301 = vcmp.eq.s32.totalorder %v1296, 2
    %v1302 = vxor.u32 %v1292, 2147483648
    %v1303 = vsel %vm1301, %v1302, %v1293
    %v1304 = vsel %vm1297, %v1300, %v1303
    %v1305 = vsel %vm1294, nan, %v1304
    %v1306 = vstv %s75
    %v1307 = vmul.f32 %v1306, %v1305
    %v1308 = vadd.f32 %v1086, %v1307
    %v1309 = vstv %s36
    %v1310 = vmul.f32 %v86, %v1309
    %v1311 = vstv %s56
    %v1312 = vadd.f32 %v1310, %v1311
    %v1313 = vand.u32 2147483647, %v1312
    %vm1314 = vcmp.le.f32.partialorder %v1313, 0.7853982
    %vm1315 = vcmp.lt.s32.totalorder %v1312, 0
    %v1316 = vand.u32 %v1312, 2139095040
    %v1317 = vshrl.u32 %v1316, 23
    %v1318 = vsub.s32 %v1317, 127
    %v1319 = vand.u32 2147483647, %v1312
    %v1320 = vand.u32 %v1319, 8388607
    %v1321 = vor.u32 %v1320, 8388608
    %v1322 = vsub.s32 0, %v1321
    %v1323 = vadd.s32 %v1318, 1
    %vm1324 = vcmp.gt.s32.totalorder %v1323, 0
    %v1325 = vsel %vm1324, %v1323, 0
    %v1326 = vshrl.u32 %v1325, 5
    %v1327 = vand.u32 %v1325, 31
    %v1328 = vsub.s32 32, %v1327
    %v1329 = vshrl.u32 683565275, %v1328
    %v1330 = vshll.u32 683565275, %v1327
    %v1331 = vshrl.u32 2475754826, %v1328
    %v1332 = vor.u32 %v1330, %v1331
    %v1333 = vshll.u32 2475754826, %v1327
    %v1334 = vshrl.u32 2131351028, %v1328
    %v1335 = vor.u32 %v1333, %v1334
    %v1336 = vshll.u32 2131351028, %v1327
    %v1337 = vshrl.u32 2102212464, %v1328
    %v1338 = vor.u32 %v1336, %v1337
    %v1339 = vshll.u32 2102212464, %v1327
    %v1340 = vshrl.u32 920167782, %v1328
    %v1341 = vor.u32 %v1339, %v1340
    %v1342 = vshll.u32 920167782, %v1327
    %v1343 = vshrl.u32 1326507024, %v1328
    %v1344 = vor.u32 %v1342, %v1343
    %vm1345 = vcmp.lt.s32.totalorder %v1326, 1
    %vm1346 = vcmp.lt.s32.totalorder %v1326, 2
    %vm1347 = vcmp.lt.s32.totalorder %v1326, 3
    %vm1348 = vcmp.lt.s32.totalorder %v1326, 4
    %v1349 = vsel %vm1345, %v1329, %v1332
    %v1350 = vsel %vm1348, %v1338, 2102212464
    %v1351 = vsel %vm1347, %v1335, %v1350
    %v1352 = vsel %vm1346, %v1349, %v1351
    %v1353 = vsel %vm1345, %v1332, %v1335
    %v1354 = vsel %vm1348, %v1341, 920167782
    %v1355 = vsel %vm1347, %v1338, %v1354
    %v1356 = vsel %vm1346, %v1353, %v1355
    %v1357 = vsel %vm1345, %v1335, %v1338
    %v1358 = vsel %vm1348, %v1344, 1326507024
    %v1359 = vsel %vm1347, %v1341, %v1358
    %v1360 = vsel %vm1346, %v1357, %v1359
    %v1361 = vshll.u32 %v1321, 8
    %v1362 = vmul.u32.u64.compose %v1361, %v1360
    %v1363 = vextract.low.u32 %v1362
    %v1364 = vextract.high.u32 %v1362
    %v1365 = vmul.u32.u64.compose %v1361, %v1356
    %v1366 = vextract.low.u32 %v1365
    %v1367 = vextract.high.u32 %v1365
    %v1368 = vmul.u32 %v1361, %v1352
    %v1369 = vadd.s32 %v1364, %v1366
    %vm1370 = vc.u32 %v1364, %v1366
    %v1371 = vadd.s32 %v1367, 1
    %v1372 = vsel %vm1370, %v1371, %v1367
    %v1373 = vadd.s32 %v1368, %v1372
    %v1374 = vadd.s32 %v1373, 536870912
    %v1375 = vshrl.u32 %v1374, 30
    %v1376 = vshll.u32 %v1375, 30
    %v1377 = vsub.s32 %v1373, %v1376
    %vm1378 = vcmp.lt.s32.totalorder %v1377, 0
    %v1379 = vsub.s32 0, %v1377
    %v1380 = vsel %vm1378, %v1379, %v1377
    %v1381 = vclz %v1380
    %v1382 = vsub.s32 %v1381, 2
    %vm1383 = vcmp.gt.s32.totalorder 0, %v1382
    %v1384 = vsel %vm1383, 0, %v1382
    %v1385 = vsub.s32 32, %v1384
    %v1386 = vshll.u32 %v1377, %v1384
    %v1387 = vshrl.u32 %v1369, %v1385
    %v1388 = vor.u32 %v1386, %v1387
    %v1389 = vsub.s32 4294967266, %v1384
    %v1390 = vadd.s32 %v1389, 127
    %v1391 = vshll.u32 %v1390, 23
    %v1392 = vor.u32 4788187, %v1391
    %v1393 = vand.u32 2147483647, %v1392
    %v1395 = vcvt.s32.f32 %v1388
    %v1396 = vmul.f32 %v1395, %v1393
    %v1397 = vxor.u32 %v1396, 2147483648
    %v1398 = vsel %vm1315, %v1397, %v1396
    %v1399 = vsub.s32 4, %v1375
    %v1400 = vsel %vm1315, %v1399, %v1375
    %v1401 = vsel %vm1314, %v1312, %v1398
    %v1402 = vsel %vm1314, 0, %v1400
    %v1403 = vcosq.f32.pop %v1401
    %v1404 = vsinq.f32.pop %v1401
    %vm1405 = vweird.f32 %v1312
    %v1406 = vadd.s32 %v1402, 3
    %v1407 = vand.u32 %v1406, 3
    %vm1408 = vcmp.lt.s32.totalorder %v1407, 2
    %vm1409 = vcmp.eq.s32.totalorder %v1407, 0
    %v1410 = vxor.u32 %v1404, 2147483648
    %v1411 = vsel %vm1409, %v1403, %v1410
    %vm1412 = vcmp.eq.s32.totalorder %v1407, 2
    %v1413 = vxor.u32 %v1403, 2147483648
    %v1414 = vsel %vm1412, %v1413, %v1404
    %v1415 = vsel %vm1408, %v1411, %v1414
    %v1416 = vsel %vm1405, nan, %v1415
    %v1417 = vstv %s76
    %v1418 = vmul.f32 %v1417, %v1416
    %v1419 = vadd.f32 %v1197, %v1418
    %v1420 = vstv %s37
    %v1421 = vmul.f32 %v86, %v1420
    %v1422 = vstv %s57
    %v1423 = vadd.f32 %v1421, %v1422
    %v1424 = vand.u32 2147483647, %v1423
    %vm1425 = vcmp.le.f32.partialorder %v1424, 0.7853982
    %vm1426 = vcmp.lt.s32.totalorder %v1423, 0
    %v1427 = vand.u32 %v1423, 2139095040
    %v1428 = vshrl.u32 %v1427, 23
    %v1429 = vsub.s32 %v1428, 127
    %v1430 = vand.u32 2147483647, %v1423
    %v1431 = vand.u32 %v1430, 8388607
    %v1432 = vor.u32 %v1431, 8388608
    %v1433 = vsub.s32 0, %v1432
    %v1434 = vadd.s32 %v1429, 1
    %vm1435 = vcmp.gt.s32.totalorder %v1434, 0
    %v1436 = vsel %vm1435, %v1434, 0
    %v1437 = vshrl.u32 %v1436, 5
    %v1438 = vand.u32 %v1436, 31
    %v1439 = vsub.s32 32, %v1438
    %v1440 = vshrl.u32 683565275, %v1439
    %v1441 = vshll.u32 683565275, %v1438
    %v1442 = vshrl.u32 2475754826, %v1439
    %v1443 = vor.u32 %v1441, %v1442
    %v1444 = vshll.u32 2475754826, %v1438
    %v1445 = vshrl.u32 2131351028, %v1439
    %v1446 = vor.u32 %v1444, %v1445
    %v1447 = vshll.u32 2131351028, %v1438
    %v1448 = vshrl.u32 2102212464, %v1439
    %v1449 = vor.u32 %v1447, %v1448
    %v1450 = vshll.u32 2102212464, %v1438
    %v1451 = vshrl.u32 920167782, %v1439
    %v1452 = vor.u32 %v1450, %v1451
    %v1453 = vshll.u32 920167782, %v1438
    %v1454 = vshrl.u32 1326507024, %v1439
    %v1455 = vor.u32 %v1453, %v1454
    %vm1456 = vcmp.lt.s32.totalorder %v1437, 1
    %vm1457 = vcmp.lt.s32.totalorder %v1437, 2
    %vm1458 = vcmp.lt.s32.totalorder %v1437, 3
    %vm1459 = vcmp.lt.s32.totalorder %v1437, 4
    %v1460 = vsel %vm1456, %v1440, %v1443
    %v1461 = vsel %vm1459, %v1449, 2102212464
    %v1462 = vsel %vm1458, %v1446, %v1461
    %v1463 = vsel %vm1457, %v1460, %v1462
    %v1464 = vsel %vm1456, %v1443, %v1446
    %v1465 = vsel %vm1459, %v1452, 920167782
    %v1466 = vsel %vm1458, %v1449, %v1465
    %v1467 = vsel %vm1457, %v1464, %v1466
    %v1468 = vsel %vm1456, %v1446, %v1449
    %v1469 = vsel %vm1459, %v1455, 1326507024
    %v1470 = vsel %vm1458, %v1452, %v1469
    %v1471 = vsel %vm1457, %v1468, %v1470
    %v1472 = vshll.u32 %v1432, 8
    %v1473 = vmul.u32.u64.compose %v1472, %v1471
    %v1474 = vextract.low.u32 %v1473
    %v1475 = vextract.high.u32 %v1473
    %v1476 = vmul.u32.u64.compose %v1472, %v1467
    %v1477 = vextract.low.u32 %v1476
    %v1478 = vextract.high.u32 %v1476
    %v1479 = vmul.u32 %v1472, %v1463
    %v1480 = vadd.s32 %v1475, %v1477
    %vm1481 = vc.u32 %v1475, %v1477
    %v1482 = vadd.s32 %v1478, 1
    %v1483 = vsel %vm1481, %v1482, %v1478
    %v1484 = vadd.s32 %v1479, %v1483
    %v1485 = vadd.s32 %v1484, 536870912
    %v1486 = vshrl.u32 %v1485, 30
    %v1487 = vshll.u32 %v1486, 30
    %v1488 = vsub.s32 %v1484, %v1487
    %vm1489 = vcmp.lt.s32.totalorder %v1488, 0
    %v1490 = vsub.s32 0, %v1488
    %v1491 = vsel %vm1489, %v1490, %v1488
    %v1492 = vclz %v1491
    %v1493 = vsub.s32 %v1492, 2
    %vm1494 = vcmp.gt.s32.totalorder 0, %v1493
    %v1495 = vsel %vm1494, 0, %v1493
    %v1496 = vsub.s32 32, %v1495
    %v1497 = vshll.u32 %v1488, %v1495
    %v1498 = vshrl.u32 %v1480, %v1496
    %v1499 = vor.u32 %v1497, %v1498
    %v1500 = vsub.s32 4294967266, %v1495
    %v1501 = vadd.s32 %v1500, 127
    %v1502 = vshll.u32 %v1501, 23
    %v1503 = vor.u32 4788187, %v1502
    %v1504 = vand.u32 2147483647, %v1503
    %v1506 = vcvt.s32.f32 %v1499
    %v1507 = vmul.f32 %v1506, %v1504
    %v1508 = vxor.u32 %v1507, 2147483648
    %v1509 = vsel %vm1426, %v1508, %v1507
    %v1510 = vsub.s32 4, %v1486
    %v1511 = vsel %vm1426, %v1510, %v1486
    %v1512 = vsel %vm1425, %v1423, %v1509
    %v1513 = vsel %vm1425, 0, %v1511
    %v1514 = vcosq.f32.pop %v1512
    %v1515 = vsinq.f32.pop %v1512
    %vm1516 = vweird.f32 %v1423
    %v1517 = vadd.s32 %v1513, 3
    %v1518 = vand.u32 %v1517, 3
    %vm1519 = vcmp.lt.s32.totalorder %v1518, 2
    %vm1520 = vcmp.eq.s32.totalorder %v1518, 0
    %v1521 = vxor.u32 %v1515, 2147483648
    %v1522 = vsel %vm1520, %v1514, %v1521
    %vm1523 = vcmp.eq.s32.totalorder %v1518, 2
    %v1524 = vxor.u32 %v1514, 2147483648
    %v1525 = vsel %vm1523, %v1524, %v1515
    %v1526 = vsel %vm1519, %v1522, %v1525
    %v1527 = vsel %vm1516, nan, %v1526
    %v1528 = vstv %s77
    %v1529 = vmul.f32 %v1528, %v1527
    %v1530 = vadd.f32 %v1308, %v1529
    %v1531 = vstv %s38
    %v1532 = vmul.f32 %v86, %v1531
    %v1533 = vstv %s58
    %v1534 = vadd.f32 %v1532, %v1533
    %v1535 = vand.u32 2147483647, %v1534
    %vm1536 = vcmp.le.f32.partialorder %v1535, 0.7853982
    %vm1537 = vcmp.lt.s32.totalorder %v1534, 0
    %v1538 = vand.u32 %v1534, 2139095040
    %v1539 = vshrl.u32 %v1538, 23
    %v1540 = vsub.s32 %v1539, 127
    %v1541 = vand.u32 2147483647, %v1534
    %v1542 = vand.u32 %v1541, 8388607
    %v1543 = vor.u32 %v1542, 8388608
    %v1544 = vsub.s32 0, %v1543
    %v1545 = vadd.s32 %v1540, 1
    %vm1546 = vcmp.gt.s32.totalorder %v1545, 0
    %v1547 = vsel %vm1546, %v1545, 0
    %v1548 = vshrl.u32 %v1547, 5
    %v1549 = vand.u32 %v1547, 31
    %v1550 = vsub.s32 32, %v1549
    %v1551 = vshrl.u32 683565275, %v1550
    %v1552 = vshll.u32 683565275, %v1549
    %v1553 = vshrl.u32 2475754826, %v1550
    %v1554 = vor.u32 %v1552, %v1553
    %v1555 = vshll.u32 2475754826, %v1549
    %v1556 = vshrl.u32 2131351028, %v1550
    %v1557 = vor.u32 %v1555, %v1556
    %v1558 = vshll.u32 2131351028, %v1549
    %v1559 = vshrl.u32 2102212464, %v1550
    %v1560 = vor.u32 %v1558, %v1559
    %v1561 = vshll.u32 2102212464, %v1549
    %v1562 = vshrl.u32 920167782, %v1550
    %v1563 = vor.u32 %v1561, %v1562
    %v1564 = vshll.u32 920167782, %v1549
    %v1565 = vshrl.u32 1326507024, %v1550
    %v1566 = vor.u32 %v1564, %v1565
    %vm1567 = vcmp.lt.s32.totalorder %v1548, 1
    %vm1568 = vcmp.lt.s32.totalorder %v1548, 2
    %vm1569 = vcmp.lt.s32.totalorder %v1548, 3
    %vm1570 = vcmp.lt.s32.totalorder %v1548, 4
    %v1571 = vsel %vm1567, %v1551, %v1554
    %v1572 = vsel %vm1570, %v1560, 2102212464
    %v1573 = vsel %vm1569, %v1557, %v1572
    %v1574 = vsel %vm1568, %v1571, %v1573
    %v1575 = vsel %vm1567, %v1554, %v1557
    %v1576 = vsel %vm1570, %v1563, 920167782
    %v1577 = vsel %vm1569, %v1560, %v1576
    %v1578 = vsel %vm1568, %v1575, %v1577
    %v1579 = vsel %vm1567, %v1557, %v1560
    %v1580 = vsel %vm1570, %v1566, 1326507024
    %v1581 = vsel %vm1569, %v1563, %v1580
    %v1582 = vsel %vm1568, %v1579, %v1581
    %v1583 = vshll.u32 %v1543, 8
    %v1584 = vmul.u32.u64.compose %v1583, %v1582
    %v1585 = vextract.low.u32 %v1584
    %v1586 = vextract.high.u32 %v1584
    %v1587 = vmul.u32.u64.compose %v1583, %v1578
    %v1588 = vextract.low.u32 %v1587
    %v1589 = vextract.high.u32 %v1587
    %v1590 = vmul.u32 %v1583, %v1574
    %v1591 = vadd.s32 %v1586, %v1588
    %vm1592 = vc.u32 %v1586, %v1588
    %v1593 = vadd.s32 %v1589, 1
    %v1594 = vsel %vm1592, %v1593, %v1589
    %v1595 = vadd.s32 %v1590, %v1594
    %v1596 = vadd.s32 %v1595, 536870912
    %v1597 = vshrl.u32 %v1596, 30
    %v1598 = vshll.u32 %v1597, 30
    %v1599 = vsub.s32 %v1595, %v1598
    %vm1600 = vcmp.lt.s32.totalorder %v1599, 0
    %v1601 = vsub.s32 0, %v1599
    %v1602 = vsel %vm1600, %v1601, %v1599
    %v1603 = vclz %v1602
    %v1604 = vsub.s32 %v1603, 2
    %vm1605 = vcmp.gt.s32.totalorder 0, %v1604
    %v1606 = vsel %vm1605, 0, %v1604
    %v1607 = vsub.s32 32, %v1606
    %v1608 = vshll.u32 %v1599, %v1606
    %v1609 = vshrl.u32 %v1591, %v1607
    %v1610 = vor.u32 %v1608, %v1609
    %v1611 = vsub.s32 4294967266, %v1606
    %v1612 = vadd.s32 %v1611, 127
    %v1613 = vshll.u32 %v1612, 23
    %v1614 = vor.u32 4788187, %v1613
    %v1615 = vand.u32 2147483647, %v1614
    %v1617 = vcvt.s32.f32 %v1610
    %v1618 = vmul.f32 %v1617, %v1615
    %v1619 = vxor.u32 %v1618, 2147483648
    %v1620 = vsel %vm1537, %v1619, %v1618
    %v1621 = vsub.s32 4, %v1597
    %v1622 = vsel %vm1537, %v1621, %v1597
    %v1623 = vsel %vm1536, %v1534, %v1620
    %v1624 = vsel %vm1536, 0, %v1622
    %v1625 = vcosq.f32.pop %v1623
    %v1626 = vsinq.f32.pop %v1623
    %vm1627 = vweird.f32 %v1534
    %v1628 = vadd.s32 %v1624, 3
    %v1629 = vand.u32 %v1628, 3
    %vm1630 = vcmp.lt.s32.totalorder %v1629, 2
    %vm1631 = vcmp.eq.s32.totalorder %v1629, 0
    %v1632 = vxor.u32 %v1626, 2147483648
    %v1633 = vsel %vm1631, %v1625, %v1632
    %vm1634 = vcmp.eq.s32.totalorder %v1629, 2
    %v1635 = vxor.u32 %v1625, 2147483648
    %v1636 = vsel %vm1634, %v1635, %v1626
    %v1637 = vsel %vm1630, %v1633, %v1636
    %v1638 = vsel %vm1627, nan, %v1637
    %v1639 = vstv %s78
    %v1640 = vmul.f32 %v1639, %v1638
    %v1641 = vadd.f32 %v1419, %v1640
    %v1642 = vstv %s39
    %v1643 = vmul.f32 %v86, %v1642
    %v1644 = vstv %s59
    %v1645 = vadd.f32 %v1643, %v1644
    %v1646 = vand.u32 2147483647, %v1645
    %vm1647 = vcmp.le.f32.partialorder %v1646, 0.7853982
    %vm1648 = vcmp.lt.s32.totalorder %v1645, 0
    %v1649 = vand.u32 %v1645, 2139095040
    %v1650 = vshrl.u32 %v1649, 23
    %v1651 = vsub.s32 %v1650, 127
    %v1652 = vand.u32 2147483647, %v1645
    %v1653 = vand.u32 %v1652, 8388607
    %v1654 = vor.u32 %v1653, 8388608
    %v1655 = vsub.s32 0, %v1654
    %v1656 = vadd.s32 %v1651, 1
    %vm1657 = vcmp.gt.s32.totalorder %v1656, 0
    %v1658 = vsel %vm1657, %v1656, 0
    %v1659 = vshrl.u32 %v1658, 5
    %v1660 = vand.u32 %v1658, 31
    %v1661 = vsub.s32 32, %v1660
    %v1662 = vshrl.u32 683565275, %v1661
    %v1663 = vshll.u32 683565275, %v1660
    %v1664 = vshrl.u32 2475754826, %v1661
    %v1665 = vor.u32 %v1663, %v1664
    %v1666 = vshll.u32 2475754826, %v1660
    %v1667 = vshrl.u32 2131351028, %v1661
    %v1668 = vor.u32 %v1666, %v1667
    %v1669 = vshll.u32 2131351028, %v1660
    %v1670 = vshrl.u32 2102212464, %v1661
    %v1671 = vor.u32 %v1669, %v1670
    %v1672 = vshll.u32 2102212464, %v1660
    %v1673 = vshrl.u32 920167782, %v1661
    %v1674 = vor.u32 %v1672, %v1673
    %v1675 = vshll.u32 920167782, %v1660
    %v1676 = vshrl.u32 1326507024, %v1661
    %v1677 = vor.u32 %v1675, %v1676
    %vm1678 = vcmp.lt.s32.totalorder %v1659, 1
    %vm1679 = vcmp.lt.s32.totalorder %v1659, 2
    %vm1680 = vcmp.lt.s32.totalorder %v1659, 3
    %vm1681 = vcmp.lt.s32.totalorder %v1659, 4
    %v1682 = vsel %vm1678, %v1662, %v1665
    %v1683 = vsel %vm1681, %v1671, 2102212464
    %v1684 = vsel %vm1680, %v1668, %v1683
    %v1685 = vsel %vm1679, %v1682, %v1684
    %v1686 = vsel %vm1678, %v1665, %v1668
    %v1687 = vsel %vm1681, %v1674, 920167782
    %v1688 = vsel %vm1680, %v1671, %v1687
    %v1689 = vsel %vm1679, %v1686, %v1688
    %v1690 = vsel %vm1678, %v1668, %v1671
    %v1691 = vsel %vm1681, %v1677, 1326507024
    %v1692 = vsel %vm1680, %v1674, %v1691
    %v1693 = vsel %vm1679, %v1690, %v1692
    %v1694 = vshll.u32 %v1654, 8
    %v1695 = vmul.u32.u64.compose %v1694, %v1693
    %v1696 = vextract.low.u32 %v1695
    %v1697 = vextract.high.u32 %v1695
    %v1698 = vmul.u32.u64.compose %v1694, %v1689
    %v1699 = vextract.low.u32 %v1698
    %v1700 = vextract.high.u32 %v1698
    %v1701 = vmul.u32 %v1694, %v1685
    %v1702 = vadd.s32 %v1697, %v1699
    %vm1703 = vc.u32 %v1697, %v1699
    %v1704 = vadd.s32 %v1700, 1
    %v1705 = vsel %vm1703, %v1704, %v1700
    %v1706 = vadd.s32 %v1701, %v1705
    %v1707 = vadd.s32 %v1706, 536870912
    %v1708 = vshrl.u32 %v1707, 30
    %v1709 = vshll.u32 %v1708, 30
    %v1710 = vsub.s32 %v1706, %v1709
    %vm1711 = vcmp.lt.s32.totalorder %v1710, 0
    %v1712 = vsub.s32 0, %v1710
    %v1713 = vsel %vm1711, %v1712, %v1710
    %v1714 = vclz %v1713
    %v1715 = vsub.s32 %v1714, 2
    %vm1716 = vcmp.gt.s32.totalorder 0, %v1715
    %v1717 = vsel %vm1716, 0, %v1715
    %v1718 = vsub.s32 32, %v1717
    %v1719 = vshll.u32 %v1710, %v1717
    %v1720 = vshrl.u32 %v1702, %v1718
    %v1721 = vor.u32 %v1719, %v1720
    %v1722 = vsub.s32 4294967266, %v1717
    %v1723 = vadd.s32 %v1722, 127
    %v1724 = vshll.u32 %v1723, 23
    %v1725 = vor.u32 4788187, %v1724
    %v1726 = vand.u32 2147483647, %v1725
    %v1728 = vcvt.s32.f32 %v1721
    %v1729 = vmul.f32 %v1728, %v1726
    %v1730 = vxor.u32 %v1729, 2147483648
    %v1731 = vsel %vm1648, %v1730, %v1729
    %v1732 = vsub.s32 4, %v1708
    %v1733 = vsel %vm1648, %v1732, %v1708
    %v1734 = vsel %vm1647, %v1645, %v1731
    %v1735 = vsel %vm1647, 0, %v1733
    %v1736 = vcosq.f32.pop %v1734
    %v1737 = vsinq.f32.pop %v1734
    %vm1738 = vweird.f32 %v1645
    %v1739 = vadd.s32 %v1735, 3
    %v1740 = vand.u32 %v1739, 3
    %vm1741 = vcmp.lt.s32.totalorder %v1740, 2
    %vm1742 = vcmp.eq.s32.totalorder %v1740, 0
    %v1743 = vxor.u32 %v1737, 2147483648
    %v1744 = vsel %vm1742, %v1736, %v1743
    %vm1745 = vcmp.eq.s32.totalorder %v1740, 2
    %v1746 = vxor.u32 %v1736, 2147483648
    %v1747 = vsel %vm1745, %v1746, %v1737
    %v1748 = vsel %vm1741, %v1744, %v1747
    %v1749 = vsel %vm1738, nan, %v1748
    %v1750 = vstv %s79
    %v1751 = vmul.f32 %v1750, %v1749
    %v1752 = vadd.f32 %v1530, %v1751
    %v1753 = vstv %s40
    %v1754 = vmul.f32 %v86, %v1753
    %v1755 = vstv %s60
    %v1756 = vadd.f32 %v1754, %v1755
    %v1757 = vand.u32 2147483647, %v1756
    %vm1758 = vcmp.le.f32.partialorder %v1757, 0.7853982
    %vm1759 = vcmp.lt.s32.totalorder %v1756, 0
    %v1760 = vand.u32 %v1756, 2139095040
    %v1761 = vshrl.u32 %v1760, 23
    %v1762 = vsub.s32 %v1761, 127
    %v1763 = vand.u32 2147483647, %v1756
    %v1764 = vand.u32 %v1763, 8388607
    %v1765 = vor.u32 %v1764, 8388608
    %v1766 = vsub.s32 0, %v1765
    %v1767 = vadd.s32 %v1762, 1
    %vm1768 = vcmp.gt.s32.totalorder %v1767, 0
    %v1769 = vsel %vm1768, %v1767, 0
    %v1770 = vshrl.u32 %v1769, 5
    %v1771 = vand.u32 %v1769, 31
    %v1772 = vsub.s32 32, %v1771
    %v1773 = vshrl.u32 683565275, %v1772
    %v1774 = vshll.u32 683565275, %v1771
    %v1775 = vshrl.u32 2475754826, %v1772
    %v1776 = vor.u32 %v1774, %v1775
    %v1777 = vshll.u32 2475754826, %v1771
    %v1778 = vshrl.u32 2131351028, %v1772
    %v1779 = vor.u32 %v1777, %v1778
    %v1780 = vshll.u32 2131351028, %v1771
    %v1781 = vshrl.u32 2102212464, %v1772
    %v1782 = vor.u32 %v1780, %v1781
    %v1783 = vshll.u32 2102212464, %v1771
    %v1784 = vshrl.u32 920167782, %v1772
    %v1785 = vor.u32 %v1783, %v1784
    %v1786 = vshll.u32 920167782, %v1771
    %v1787 = vshrl.u32 1326507024, %v1772
    %v1788 = vor.u32 %v1786, %v1787
    %vm1789 = vcmp.lt.s32.totalorder %v1770, 1
    %vm1790 = vcmp.lt.s32.totalorder %v1770, 2
    %vm1791 = vcmp.lt.s32.totalorder %v1770, 3
    %vm1792 = vcmp.lt.s32.totalorder %v1770, 4
    %v1793 = vsel %vm1789, %v1773, %v1776
    %v1794 = vsel %vm1792, %v1782, 2102212464
    %v1795 = vsel %vm1791, %v1779, %v1794
    %v1796 = vsel %vm1790, %v1793, %v1795
    %v1797 = vsel %vm1789, %v1776, %v1779
    %v1798 = vsel %vm1792, %v1785, 920167782
    %v1799 = vsel %vm1791, %v1782, %v1798
    %v1800 = vsel %vm1790, %v1797, %v1799
    %v1801 = vsel %vm1789, %v1779, %v1782
    %v1802 = vsel %vm1792, %v1788, 1326507024
    %v1803 = vsel %vm1791, %v1785, %v1802
    %v1804 = vsel %vm1790, %v1801, %v1803
    %v1805 = vshll.u32 %v1765, 8
    %v1806 = vmul.u32.u64.compose %v1805, %v1804
    %v1807 = vextract.low.u32 %v1806
    %v1808 = vextract.high.u32 %v1806
    %v1809 = vmul.u32.u64.compose %v1805, %v1800
    %v1810 = vextract.low.u32 %v1809
    %v1811 = vextract.high.u32 %v1809
    %v1812 = vmul.u32 %v1805, %v1796
    %v1813 = vadd.s32 %v1808, %v1810
    %vm1814 = vc.u32 %v1808, %v1810
    %v1815 = vadd.s32 %v1811, 1
    %v1816 = vsel %vm1814, %v1815, %v1811
    %v1817 = vadd.s32 %v1812, %v1816
    %v1818 = vadd.s32 %v1817, 536870912
    %v1819 = vshrl.u32 %v1818, 30
    %v1820 = vshll.u32 %v1819, 30
    %v1821 = vsub.s32 %v1817, %v1820
    %vm1822 = vcmp.lt.s32.totalorder %v1821, 0
    %v1823 = vsub.s32 0, %v1821
    %v1824 = vsel %vm1822, %v1823, %v1821
    %v1825 = vclz %v1824
    %v1826 = vsub.s32 %v1825, 2
    %vm1827 = vcmp.gt.s32.totalorder 0, %v1826
    %v1828 = vsel %vm1827, 0, %v1826
    %v1829 = vsub.s32 32, %v1828
    %v1830 = vshll.u32 %v1821, %v1828
    %v1831 = vshrl.u32 %v1813, %v1829
    %v1832 = vor.u32 %v1830, %v1831
    %v1833 = vsub.s32 4294967266, %v1828
    %v1834 = vadd.s32 %v1833, 127
    %v1835 = vshll.u32 %v1834, 23
    %v1836 = vor.u32 4788187, %v1835
    %v1837 = vand.u32 2147483647, %v1836
    %v1839 = vcvt.s32.f32 %v1832
    %v1840 = vmul.f32 %v1839, %v1837
    %v1841 = vxor.u32 %v1840, 2147483648
    %v1842 = vsel %vm1759, %v1841, %v1840
    %v1843 = vsub.s32 4, %v1819
    %v1844 = vsel %vm1759, %v1843, %v1819
    %v1845 = vsel %vm1758, %v1756, %v1842
    %v1846 = vsel %vm1758, 0, %v1844
    %v1847 = vcosq.f32.pop %v1845
    %v1848 = vsinq.f32.pop %v1845
    %vm1849 = vweird.f32 %v1756
    %v1850 = vadd.s32 %v1846, 3
    %v1851 = vand.u32 %v1850, 3
    %vm1852 = vcmp.lt.s32.totalorder %v1851, 2
    %vm1853 = vcmp.eq.s32.totalorder %v1851, 0
    %v1854 = vxor.u32 %v1848, 2147483648
    %v1855 = vsel %vm1853, %v1847, %v1854
    %vm1856 = vcmp.eq.s32.totalorder %v1851, 2
    %v1857 = vxor.u32 %v1847, 2147483648
    %v1858 = vsel %vm1856, %v1857, %v1848
    %v1859 = vsel %vm1852, %v1855, %v1858
    %v1860 = vsel %vm1849, nan, %v1859
    %v1861 = vstv %s80
    %v1862 = vmul.f32 %v1861, %v1860
    %v1863 = vadd.f32 %v1641, %v1862
    %v1864 = vstv %s41
    %v1865 = vmul.f32 %v86, %v1864
    %v1866 = vstv %s61
    %v1867 = vadd.f32 %v1865, %v1866
    %v1868 = vand.u32 2147483647, %v1867
    %vm1869 = vcmp.le.f32.partialorder %v1868, 0.7853982
    %vm1870 = vcmp.lt.s32.totalorder %v1867, 0
    %v1871 = vand.u32 %v1867, 2139095040
    %v1872 = vshrl.u32 %v1871, 23
    %v1873 = vsub.s32 %v1872, 127
    %v1874 = vand.u32 2147483647, %v1867
    %v1875 = vand.u32 %v1874, 8388607
    %v1876 = vor.u32 %v1875, 8388608
    %v1877 = vsub.s32 0, %v1876
    %v1878 = vadd.s32 %v1873, 1
    %vm1879 = vcmp.gt.s32.totalorder %v1878, 0
    %v1880 = vsel %vm1879, %v1878, 0
    %v1881 = vshrl.u32 %v1880, 5
    %v1882 = vand.u32 %v1880, 31
    %v1883 = vsub.s32 32, %v1882
    %v1884 = vshrl.u32 683565275, %v1883
    %v1885 = vshll.u32 683565275, %v1882
    %v1886 = vshrl.u32 2475754826, %v1883
    %v1887 = vor.u32 %v1885, %v1886
    %v1888 = vshll.u32 2475754826, %v1882
    %v1889 = vshrl.u32 2131351028, %v1883
    %v1890 = vor.u32 %v1888, %v1889
    %v1891 = vshll.u32 2131351028, %v1882
    %v1892 = vshrl.u32 2102212464, %v1883
    %v1893 = vor.u32 %v1891, %v1892
    %v1894 = vshll.u32 2102212464, %v1882
    %v1895 = vshrl.u32 920167782, %v1883
    %v1896 = vor.u32 %v1894, %v1895
    %v1897 = vshll.u32 920167782, %v1882
    %v1898 = vshrl.u32 1326507024, %v1883
    %v1899 = vor.u32 %v1897, %v1898
    %vm1900 = vcmp.lt.s32.totalorder %v1881, 1
    %vm1901 = vcmp.lt.s32.totalorder %v1881, 2
    %vm1902 = vcmp.lt.s32.totalorder %v1881, 3
    %vm1903 = vcmp.lt.s32.totalorder %v1881, 4
    %v1904 = vsel %vm1900, %v1884, %v1887
    %v1905 = vsel %vm1903, %v1893, 2102212464
    %v1906 = vsel %vm1902, %v1890, %v1905
    %v1907 = vsel %vm1901, %v1904, %v1906
    %v1908 = vsel %vm1900, %v1887, %v1890
    %v1909 = vsel %vm1903, %v1896, 920167782
    %v1910 = vsel %vm1902, %v1893, %v1909
    %v1911 = vsel %vm1901, %v1908, %v1910
    %v1912 = vsel %vm1900, %v1890, %v1893
    %v1913 = vsel %vm1903, %v1899, 1326507024
    %v1914 = vsel %vm1902, %v1896, %v1913
    %v1915 = vsel %vm1901, %v1912, %v1914
    %v1916 = vshll.u32 %v1876, 8
    %v1917 = vmul.u32.u64.compose %v1916, %v1915
    %v1918 = vextract.low.u32 %v1917
    %v1919 = vextract.high.u32 %v1917
    %v1920 = vmul.u32.u64.compose %v1916, %v1911
    %v1921 = vextract.low.u32 %v1920
    %v1922 = vextract.high.u32 %v1920
    %v1923 = vmul.u32 %v1916, %v1907
    %v1924 = vadd.s32 %v1919, %v1921
    %vm1925 = vc.u32 %v1919, %v1921
    %v1926 = vadd.s32 %v1922, 1
    %v1927 = vsel %vm1925, %v1926, %v1922
    %v1928 = vadd.s32 %v1923, %v1927
    %v1929 = vadd.s32 %v1928, 536870912
    %v1930 = vshrl.u32 %v1929, 30
    %v1931 = vshll.u32 %v1930, 30
    %v1932 = vsub.s32 %v1928, %v1931
    %vm1933 = vcmp.lt.s32.totalorder %v1932, 0
    %v1934 = vsub.s32 0, %v1932
    %v1935 = vsel %vm1933, %v1934, %v1932
    %v1936 = vclz %v1935
    %v1937 = vsub.s32 %v1936, 2
    %vm1938 = vcmp.gt.s32.totalorder 0, %v1937
    %v1939 = vsel %vm1938, 0, %v1937
    %v1940 = vsub.s32 32, %v1939
    %v1941 = vshll.u32 %v1932, %v1939
    %v1942 = vshrl.u32 %v1924, %v1940
    %v1943 = vor.u32 %v1941, %v1942
    %v1944 = vsub.s32 4294967266, %v1939
    %v1945 = vadd.s32 %v1944, 127
    %v1946 = vshll.u32 %v1945, 23
    %v1947 = vor.u32 4788187, %v1946
    %v1948 = vand.u32 2147483647, %v1947
    %v1950 = vcvt.s32.f32 %v1943
    %v1951 = vmul.f32 %v1950, %v1948
    %v1952 = vxor.u32 %v1951, 2147483648
    %v1953 = vsel %vm1870, %v1952, %v1951
    %v1954 = vsub.s32 4, %v1930
    %v1955 = vsel %vm1870, %v1954, %v1930
    %v1956 = vsel %vm1869, %v1867, %v1953
    %v1957 = vsel %vm1869, 0, %v1955
    %v1958 = vcosq.f32.pop %v1956
    %v1959 = vsinq.f32.pop %v1956
    %vm1960 = vweird.f32 %v1867
    %v1961 = vadd.s32 %v1957, 3
    %v1962 = vand.u32 %v1961, 3
    %vm1963 = vcmp.lt.s32.totalorder %v1962, 2
    %vm1964 = vcmp.eq.s32.totalorder %v1962, 0
    %v1965 = vxor.u32 %v1959, 2147483648
    %v1966 = vsel %vm1964, %v1958, %v1965
    %vm1967 = vcmp.eq.s32.totalorder %v1962, 2
    %v1968 = vxor.u32 %v1958, 2147483648
    %v1969 = vsel %vm1967, %v1968, %v1959
    %v1970 = vsel %vm1963, %v1966, %v1969
    %v1971 = vsel %vm1960, nan, %v1970
    %v1972 = vstv %s81
    %v1973 = vmul.f32 %v1972, %v1971
    %v1974 = vadd.f32 %v1752, %v1973
    %v1975 = vstv %s42
    %v1976 = vmul.f32 %v86, %v1975
    %v1977 = vstv %s62
    %v1978 = vadd.f32 %v1976, %v1977
    %v1979 = vand.u32 2147483647, %v1978
    %vm1980 = vcmp.le.f32.partialorder %v1979, 0.7853982
    %vm1981 = vcmp.lt.s32.totalorder %v1978, 0
    %v1982 = vand.u32 %v1978, 2139095040
    %v1983 = vshrl.u32 %v1982, 23
    %v1984 = vsub.s32 %v1983, 127
    %v1985 = vand.u32 2147483647, %v1978
    %v1986 = vand.u32 %v1985, 8388607
    %v1987 = vor.u32 %v1986, 8388608
    %v1988 = vsub.s32 0, %v1987
    %v1989 = vadd.s32 %v1984, 1
    %vm1990 = vcmp.gt.s32.totalorder %v1989, 0
    %v1991 = vsel %vm1990, %v1989, 0
    %v1992 = vshrl.u32 %v1991, 5
    %v1993 = vand.u32 %v1991, 31
    %v1994 = vsub.s32 32, %v1993
    %v1995 = vshrl.u32 683565275, %v1994
    %v1996 = vshll.u32 683565275, %v1993
    %v1997 = vshrl.u32 2475754826, %v1994
    %v1998 = vor.u32 %v1996, %v1997
    %v1999 = vshll.u32 2475754826, %v1993
    %v2000 = vshrl.u32 2131351028, %v1994
    %v2001 = vor.u32 %v1999, %v2000
    %v2002 = vshll.u32 2131351028, %v1993
    %v2003 = vshrl.u32 2102212464, %v1994
    %v2004 = vor.u32 %v2002, %v2003
    %v2005 = vshll.u32 2102212464, %v1993
    %v2006 = vshrl.u32 920167782, %v1994
    %v2007 = vor.u32 %v2005, %v2006
    %v2008 = vshll.u32 920167782, %v1993
    %v2009 = vshrl.u32 1326507024, %v1994
    %v2010 = vor.u32 %v2008, %v2009
    %vm2011 = vcmp.lt.s32.totalorder %v1992, 1
    %vm2012 = vcmp.lt.s32.totalorder %v1992, 2
    %vm2013 = vcmp.lt.s32.totalorder %v1992, 3
    %vm2014 = vcmp.lt.s32.totalorder %v1992, 4
    %v2015 = vsel %vm2011, %v1995, %v1998
    %v2016 = vsel %vm2014, %v2004, 2102212464
    %v2017 = vsel %vm2013, %v2001, %v2016
    %v2018 = vsel %vm2012, %v2015, %v2017
    %v2019 = vsel %vm2011, %v1998, %v2001
    %v2020 = vsel %vm2014, %v2007, 920167782
    %v2021 = vsel %vm2013, %v2004, %v2020
    %v2022 = vsel %vm2012, %v2019, %v2021
    %v2023 = vsel %vm2011, %v2001, %v2004
    %v2024 = vsel %vm2014, %v2010, 1326507024
    %v2025 = vsel %vm2013, %v2007, %v2024
    %v2026 = vsel %vm2012, %v2023, %v2025
    %v2027 = vshll.u32 %v1987, 8
    %v2028 = vmul.u32.u64.compose %v2027, %v2026
    %v2029 = vextract.low.u32 %v2028
    %v2030 = vextract.high.u32 %v2028
    %v2031 = vmul.u32.u64.compose %v2027, %v2022
    %v2032 = vextract.low.u32 %v2031
    %v2033 = vextract.high.u32 %v2031
    %v2034 = vmul.u32 %v2027, %v2018
    %v2035 = vadd.s32 %v2030, %v2032
    %vm2036 = vc.u32 %v2030, %v2032
    %v2037 = vadd.s32 %v2033, 1
    %v2038 = vsel %vm2036, %v2037, %v2033
    %v2039 = vadd.s32 %v2034, %v2038
    %v2040 = vadd.s32 %v2039, 536870912
    %v2041 = vshrl.u32 %v2040, 30
    %v2042 = vshll.u32 %v2041, 30
    %v2043 = vsub.s32 %v2039, %v2042
    %vm2044 = vcmp.lt.s32.totalorder %v2043, 0
    %v2045 = vsub.s32 0, %v2043
    %v2046 = vsel %vm2044, %v2045, %v2043
    %v2047 = vclz %v2046
    %v2048 = vsub.s32 %v2047, 2
    %vm2049 = vcmp.gt.s32.totalorder 0, %v2048
    %v2050 = vsel %vm2049, 0, %v2048
    %v2051 = vsub.s32 32, %v2050
    %v2052 = vshll.u32 %v2043, %v2050
    %v2053 = vshrl.u32 %v2035, %v2051
    %v2054 = vor.u32 %v2052, %v2053
    %v2055 = vsub.s32 4294967266, %v2050
    %v2056 = vadd.s32 %v2055, 127
    %v2057 = vshll.u32 %v2056, 23
    %v2058 = vor.u32 4788187, %v2057
    %v2059 = vand.u32 2147483647, %v2058
    %v2061 = vcvt.s32.f32 %v2054
    %v2062 = vmul.f32 %v2061, %v2059
    %v2063 = vxor.u32 %v2062, 2147483648
    %v2064 = vsel %vm1981, %v2063, %v2062
    %v2065 = vsub.s32 4, %v2041
    %v2066 = vsel %vm1981, %v2065, %v2041
    %v2067 = vsel %vm1980, %v1978, %v2064
    %v2068 = vsel %vm1980, 0, %v2066
    %v2069 = vcosq.f32.pop %v2067
    %v2070 = vsinq.f32.pop %v2067
    %vm2071 = vweird.f32 %v1978
    %v2072 = vadd.s32 %v2068, 3
    %v2073 = vand.u32 %v2072, 3
    %vm2074 = vcmp.lt.s32.totalorder %v2073, 2
    %vm2075 = vcmp.eq.s32.totalorder %v2073, 0
    %v2076 = vxor.u32 %v2070, 2147483648
    %v2077 = vsel %vm2075, %v2069, %v2076
    %vm2078 = vcmp.eq.s32.totalorder %v2073, 2
    %v2079 = vxor.u32 %v2069, 2147483648
    %v2080 = vsel %vm2078, %v2079, %v2070
    %v2081 = vsel %vm2074, %v2077, %v2080
    %v2082 = vsel %vm2071, nan, %v2081
    %v2083 = vstv %s82
    %v2084 = vmul.f32 %v2083, %v2082
    %v2085 = vadd.f32 %v1863, %v2084
    %v2086 = vstv %s43
    %v2087 = vmul.f32 %v86, %v2086
    %v2088 = vstv %s63
    %v2089 = vadd.f32 %v2087, %v2088
    %v2090 = vand.u32 2147483647, %v2089
    %vm2091 = vcmp.le.f32.partialorder %v2090, 0.7853982
    %vm2092 = vcmp.lt.s32.totalorder %v2089, 0
    %v2093 = vand.u32 %v2089, 2139095040
    %v2094 = vshrl.u32 %v2093, 23
    %v2095 = vsub.s32 %v2094, 127
    %v2096 = vand.u32 2147483647, %v2089
    %v2097 = vand.u32 %v2096, 8388607
    %v2098 = vor.u32 %v2097, 8388608
    %v2099 = vsub.s32 0, %v2098
    %v2100 = vadd.s32 %v2095, 1
    %vm2101 = vcmp.gt.s32.totalorder %v2100, 0
    %v2102 = vsel %vm2101, %v2100, 0
    %v2103 = vshrl.u32 %v2102, 5
    %v2104 = vand.u32 %v2102, 31
    %v2105 = vsub.s32 32, %v2104
    %v2106 = vshrl.u32 683565275, %v2105
    %v2107 = vshll.u32 683565275, %v2104
    %v2108 = vshrl.u32 2475754826, %v2105
    %v2109 = vor.u32 %v2107, %v2108
    %v2110 = vshll.u32 2475754826, %v2104
    %v2111 = vshrl.u32 2131351028, %v2105
    %v2112 = vor.u32 %v2110, %v2111
    %v2113 = vshll.u32 2131351028, %v2104
    %v2114 = vshrl.u32 2102212464, %v2105
    %v2115 = vor.u32 %v2113, %v2114
    %v2116 = vshll.u32 2102212464, %v2104
    %v2117 = vshrl.u32 920167782, %v2105
    %v2118 = vor.u32 %v2116, %v2117
    %v2119 = vshll.u32 920167782, %v2104
    %v2120 = vshrl.u32 1326507024, %v2105
    %v2121 = vor.u32 %v2119, %v2120
    %vm2122 = vcmp.lt.s32.totalorder %v2103, 1
    %vm2123 = vcmp.lt.s32.totalorder %v2103, 2
    %vm2124 = vcmp.lt.s32.totalorder %v2103, 3
    %vm2125 = vcmp.lt.s32.totalorder %v2103, 4
    %v2126 = vsel %vm2122, %v2106, %v2109
    %v2127 = vsel %vm2125, %v2115, 2102212464
    %v2128 = vsel %vm2124, %v2112, %v2127
    %v2129 = vsel %vm2123, %v2126, %v2128
    %v2130 = vsel %vm2122, %v2109, %v2112
    %v2131 = vsel %vm2125, %v2118, 920167782
    %v2132 = vsel %vm2124, %v2115, %v2131
    %v2133 = vsel %vm2123, %v2130, %v2132
    %v2134 = vsel %vm2122, %v2112, %v2115
    %v2135 = vsel %vm2125, %v2121, 1326507024
    %v2136 = vsel %vm2124, %v2118, %v2135
    %v2137 = vsel %vm2123, %v2134, %v2136
    %v2138 = vshll.u32 %v2098, 8
    %v2139 = vmul.u32.u64.compose %v2138, %v2137
    %v2140 = vextract.low.u32 %v2139
    %v2141 = vextract.high.u32 %v2139
    %v2142 = vmul.u32.u64.compose %v2138, %v2133
    %v2143 = vextract.low.u32 %v2142
    %v2144 = vextract.high.u32 %v2142
    %v2145 = vmul.u32 %v2138, %v2129
    %v2146 = vadd.s32 %v2141, %v2143
    %vm2147 = vc.u32 %v2141, %v2143
    %v2148 = vadd.s32 %v2144, 1
    %v2149 = vsel %vm2147, %v2148, %v2144
    %v2150 = vadd.s32 %v2145, %v2149
    %v2151 = vadd.s32 %v2150, 536870912
    %v2152 = vshrl.u32 %v2151, 30
    %v2153 = vshll.u32 %v2152, 30
    %v2154 = vsub.s32 %v2150, %v2153
    %vm2155 = vcmp.lt.s32.totalorder %v2154, 0
    %v2156 = vsub.s32 0, %v2154
    %v2157 = vsel %vm2155, %v2156, %v2154
    %v2158 = vclz %v2157
    %v2159 = vsub.s32 %v2158, 2
    %vm2160 = vcmp.gt.s32.totalorder 0, %v2159
    %v2161 = vsel %vm2160, 0, %v2159
    %v2162 = vsub.s32 32, %v2161
    %v2163 = vshll.u32 %v2154, %v2161
    %v2164 = vshrl.u32 %v2146, %v2162
    %v2165 = vor.u32 %v2163, %v2164
    %v2166 = vsub.s32 4294967266, %v2161
    %v2167 = vadd.s32 %v2166, 127
    %v2168 = vshll.u32 %v2167, 23
    %v2169 = vor.u32 4788187, %v2168
    %v2170 = vand.u32 2147483647, %v2169
    %v2172 = vcvt.s32.f32 %v2165
    %v2173 = vmul.f32 %v2172, %v2170
    %v2174 = vxor.u32 %v2173, 2147483648
    %v2175 = vsel %vm2092, %v2174, %v2173
    %v2176 = vsub.s32 4, %v2152
    %v2177 = vsel %vm2092, %v2176, %v2152
    %v2178 = vsel %vm2091, %v2089, %v2175
    %v2179 = vsel %vm2091, 0, %v2177
    %v2180 = vcosq.f32.pop %v2178
    %v2181 = vsinq.f32.pop %v2178
    %vm2182 = vweird.f32 %v2089
    %v2183 = vadd.s32 %v2179, 3
    %v2184 = vand.u32 %v2183, 3
    %vm2185 = vcmp.lt.s32.totalorder %v2184, 2
    %vm2186 = vcmp.eq.s32.totalorder %v2184, 0
    %v2187 = vxor.u32 %v2181, 2147483648
    %v2188 = vsel %vm2186, %v2180, %v2187
    %vm2189 = vcmp.eq.s32.totalorder %v2184, 2
    %v2190 = vxor.u32 %v2180, 2147483648
    %v2191 = vsel %vm2189, %v2190, %v2181
    %v2192 = vsel %vm2185, %v2188, %v2191
    %v2193 = vsel %vm2182, nan, %v2192
    %v2194 = vstv %s83
    %v2195 = vmul.f32 %v2194, %v2193
    %v2196 = vadd.f32 %v1974, %v2195
    %v2197 = vstv %s44
    %v2198 = vmul.f32 %v86, %v2197
    %v2199 = vstv %s64
    %v2200 = vadd.f32 %v2198, %v2199
    %v2201 = vand.u32 2147483647, %v2200
    %vm2202 = vcmp.le.f32.partialorder %v2201, 0.7853982
    %vm2203 = vcmp.lt.s32.totalorder %v2200, 0
    %v2204 = vand.u32 %v2200, 2139095040
    %v2205 = vshrl.u32 %v2204, 23
    %v2206 = vsub.s32 %v2205, 127
    %v2207 = vand.u32 2147483647, %v2200
    %v2208 = vand.u32 %v2207, 8388607
    %v2209 = vor.u32 %v2208, 8388608
    %v2210 = vsub.s32 0, %v2209
    %v2211 = vadd.s32 %v2206, 1
    %vm2212 = vcmp.gt.s32.totalorder %v2211, 0
    %v2213 = vsel %vm2212, %v2211, 0
    %v2214 = vshrl.u32 %v2213, 5
    %v2215 = vand.u32 %v2213, 31
    %v2216 = vsub.s32 32, %v2215
    %v2217 = vshrl.u32 683565275, %v2216
    %v2218 = vshll.u32 683565275, %v2215
    %v2219 = vshrl.u32 2475754826, %v2216
    %v2220 = vor.u32 %v2218, %v2219
    %v2221 = vshll.u32 2475754826, %v2215
    %v2222 = vshrl.u32 2131351028, %v2216
    %v2223 = vor.u32 %v2221, %v2222
    %v2224 = vshll.u32 2131351028, %v2215
    %v2225 = vshrl.u32 2102212464, %v2216
    %v2226 = vor.u32 %v2224, %v2225
    %v2227 = vshll.u32 2102212464, %v2215
    %v2228 = vshrl.u32 920167782, %v2216
    %v2229 = vor.u32 %v2227, %v2228
    %v2230 = vshll.u32 920167782, %v2215
    %v2231 = vshrl.u32 1326507024, %v2216
    %v2232 = vor.u32 %v2230, %v2231
    %vm2233 = vcmp.lt.s32.totalorder %v2214, 1
    %vm2234 = vcmp.lt.s32.totalorder %v2214, 2
    %vm2235 = vcmp.lt.s32.totalorder %v2214, 3
    %vm2236 = vcmp.lt.s32.totalorder %v2214, 4
    %v2237 = vsel %vm2233, %v2217, %v2220
    %v2238 = vsel %vm2236, %v2226, 2102212464
    %v2239 = vsel %vm2235, %v2223, %v2238
    %v2240 = vsel %vm2234, %v2237, %v2239
    %v2241 = vsel %vm2233, %v2220, %v2223
    %v2242 = vsel %vm2236, %v2229, 920167782
    %v2243 = vsel %vm2235, %v2226, %v2242
    %v2244 = vsel %vm2234, %v2241, %v2243
    %v2245 = vsel %vm2233, %v2223, %v2226
    %v2246 = vsel %vm2236, %v2232, 1326507024
    %v2247 = vsel %vm2235, %v2229, %v2246
    %v2248 = vsel %vm2234, %v2245, %v2247
    %v2249 = vshll.u32 %v2209, 8
    %v2250 = vmul.u32.u64.compose %v2249, %v2248
    %v2251 = vextract.low.u32 %v2250
    %v2252 = vextract.high.u32 %v2250
    %v2253 = vmul.u32.u64.compose %v2249, %v2244
    %v2254 = vextract.low.u32 %v2253
    %v2255 = vextract.high.u32 %v2253
    %v2256 = vmul.u32 %v2249, %v2240
    %v2257 = vadd.s32 %v2252, %v2254
    %vm2258 = vc.u32 %v2252, %v2254
    %v2259 = vadd.s32 %v2255, 1
    %v2260 = vsel %vm2258, %v2259, %v2255
    %v2261 = vadd.s32 %v2256, %v2260
    %v2262 = vadd.s32 %v2261, 536870912
    %v2263 = vshrl.u32 %v2262, 30
    %v2264 = vshll.u32 %v2263, 30
    %v2265 = vsub.s32 %v2261, %v2264
    %vm2266 = vcmp.lt.s32.totalorder %v2265, 0
    %v2267 = vsub.s32 0, %v2265
    %v2268 = vsel %vm2266, %v2267, %v2265
    %v2269 = vclz %v2268
    %v2270 = vsub.s32 %v2269, 2
    %vm2271 = vcmp.gt.s32.totalorder 0, %v2270
    %v2272 = vsel %vm2271, 0, %v2270
    %v2273 = vsub.s32 32, %v2272
    %v2274 = vshll.u32 %v2265, %v2272
    %v2275 = vshrl.u32 %v2257, %v2273
    %v2276 = vor.u32 %v2274, %v2275
    %v2277 = vsub.s32 4294967266, %v2272
    %v2278 = vadd.s32 %v2277, 127
    %v2279 = vshll.u32 %v2278, 23
    %v2280 = vor.u32 4788187, %v2279
    %v2281 = vand.u32 2147483647, %v2280
    %v2283 = vcvt.s32.f32 %v2276
    %v2284 = vmul.f32 %v2283, %v2281
    %v2285 = vxor.u32 %v2284, 2147483648
    %v2286 = vsel %vm2203, %v2285, %v2284
    %v2287 = vsub.s32 4, %v2263
    %v2288 = vsel %vm2203, %v2287, %v2263
    %v2289 = vsel %vm2202, %v2200, %v2286
    %v2290 = vsel %vm2202, 0, %v2288
    %v2291 = vcosq.f32.pop %v2289
    %v2292 = vsinq.f32.pop %v2289
    %vm2293 = vweird.f32 %v2200
    %v2294 = vadd.s32 %v2290, 3
    %v2295 = vand.u32 %v2294, 3
    %vm2296 = vcmp.lt.s32.totalorder %v2295, 2
    %vm2297 = vcmp.eq.s32.totalorder %v2295, 0
    %v2298 = vxor.u32 %v2292, 2147483648
    %v2299 = vsel %vm2297, %v2291, %v2298
    %vm2300 = vcmp.eq.s32.totalorder %v2295, 2
    %v2301 = vxor.u32 %v2291, 2147483648
    %v2302 = vsel %vm2300, %v2301, %v2292
    %v2303 = vsel %vm2296, %v2299, %v2302
    %v2304 = vsel %vm2293, nan, %v2303
    %v2305 = vstv %s84
    %v2306 = vmul.f32 %v2305, %v2304
    %v2307 = vadd.f32 %v2085, %v2306
    %v2308 = vadd.f32 %v2196, %v2307
    %2309 = vst [vmem:[#allocation5] sm:$0xff] %v2308
    // Predicated region
    $region14: #{mynn2_forward.1} parent=1 // pred_check
      _
    $region15: #{mynn2_forward.1} parent=1 // pred_check_branch
      %2311 = sbr.rel (0) target = $region17
    $region16: #{mynn2_forward.1} parent=1 // pred_region
      %s2313 = ssub.s32 128, 128
      %2314 = vsyncadd [#allocation3], %s2313
      %s2316 = sshll.u32 [#allocation5], 4
      %s2317 = int_to_ptr.vmem [resolvable:$true] %s2316
      %2319 = dma.vmem_to_hbm [thread:$0]  %s2317, 128, %s2, [#allocation3]
    $region17: #{mynn2_forward.1} parent=1 // pred_fallthru
      _
    // Predicated region
    $region18: #{mynn2_forward.1} parent=1 // pred_check
      _
    $region19: #{mynn2_forward.1} parent=1 // pred_check_branch
      %2321 = sbr.rel (0) target = $region21
    $region20: #{mynn2_forward.1} parent=1 // pred_region
      %2322 = dma.done [#allocation3], 128
    $region21: #{mynn2_forward.1} parent=1 // pred_fallthru
      _
    %2323 = vsyncpa [#allocation3], 1
    %2324 = vsyncpa [#allocation4], 1

</llo_original>
